<compile_context>
chip_gen: v5e
topology: v5e:2x2
jax: 0.10.0
libtpu: 0.0.40
codegen_flags: <defaults>
</compile_context>

<pallas_src>
import math
from functools import partial

import jax
import jax.numpy as jnp
from jax import lax
from jax.experimental import pallas as pl
from jax.experimental.pallas import tpu as pltpu

# ---- module-consistent config (PointMAESelfAttention.Config defaults) ----
HIDDEN = 128                      # hidden_size
NUM_HEADS = 4                     # num_attention_heads
HEAD_DIM = HIDDEN // NUM_HEADS    # 32 (divisible by 8, <= 128 as the module asserts)
BATCH = 2
SEQ = 16


# ---- Pallas kernel --------------------------------------------------------
def _mha_kernel(x_ref, wqkv_ref, bqkv_ref, wo_ref, bo_ref, wd_ref, bd_ref,
                out_ref, ctx_ref, *, batch, seq, num_heads):
    """Fused QKV proj + multi-head attention + out_proj + SelfOutput.dense.

    x_ref:     (B*S, E)      batch folded into sublanes
    wqkv_ref:  (E, 3E)       fused QKV weight, pre-transposed to (in, out),
                             columns ordered (three, head, d); Q columns carry 1/sqrt(D)
    bqkv_ref:  (1, 3E)
    wo_ref:    (E, E)        out_proj, pre-transposed; rows ordered (head, d)
    bo_ref:    (1, E)
    wd_ref:    (E, E)        PointMAESelfOutput.dense, pre-transposed
    bd_ref:    (1, E)
    out_ref:   (B*S, E)      lane-dense output
    ctx_ref:   (B*S, E) f32  VMEM scratch for head-concatenated context
    """
    B, S, H = batch, seq, num_heads
    BS, E = out_ref.shape
    D = E // H

    x = x_ref[...]                                                        # (BS, E)

    # One full-lane-width fused QKV matmul: (32,128) @ (128,384).
    qkv = jnp.dot(x, wqkv_ref[...],
                  preferred_element_type=jnp.float32) + bqkv_ref[...]     # (BS, 3E)
    q = qkv[:, 0 * E:1 * E]        # already scaled by 1/sqrt(D) via weight prep
    k = qkv[:, 1 * E:2 * E]
    v = qkv[:, 2 * E:3 * E]

    # Per-(batch, head) (S, S) score tiles; packed along sublanes so the whole
    # softmax (max / exp / sum / reciprocal) is issued once on a (B*H*S, S) block.
    tiles = []
    for b in range(B):
        for h in range(H):
            q_bh = q[b * S:(b + 1) * S, h * D:(h + 1) * D]                # (S, D)
            k_bh = k[b * S:(b + 1) * S, h * D:(h + 1) * D]                # (S, D)
            # contract head dim of both operands directly (no transpose)
            tiles.append(lax.dot_general(q_bh, k_bh, (((1,), (1,)), ((), ())),
                                         preferred_element_type=jnp.float32))
    scores = jnp.concatenate(tiles, axis=0)                               # (B*H*S, S)

    m = jnp.max(scores, axis=-1, keepdims=True)
    e = jnp.exp(scores - m)
    p = e * pl.reciprocal(jnp.sum(e, axis=-1, keepdims=True))             # softmax

    # P @ V per (b, h); write each head's context at lane offset h*D of the
    # scratch so out_proj becomes a single full-width matmul.
    for b in range(B):
        for h in range(H):
            t = b * H + h
            p_bh = p[t * S:(t + 1) * S, :]                                # (S, S)
            v_bh = v[b * S:(b + 1) * S, h * D:(h + 1) * D]                # (S, D)
            ctx_ref[pl.ds(b * S, S), pl.ds(h * D, D)] = jnp.dot(
                p_bh, v_bh, preferred_element_type=jnp.float32)

    # out_proj: (32,128) @ (128,128)
    y = jnp.dot(ctx_ref[...], wo_ref[...],
                preferred_element_type=jnp.float32) + bo_ref[...]
    # PointMAESelfOutput.dense (dropout p=0.0 -> identity; residual applied by caller)
    out = jnp.dot(y, wd_ref[...],
                  preferred_element_type=jnp.float32) + bd_ref[...]
    out_ref[...] = out.astype(out_ref.dtype)                              # lane-dense store


# ---- one-time weight re-layout (hoisted out of the per-call path) ---------
def prepare_params(params):
    """Re-layout PyTorch-style weights for the kernel. Call once per weight set."""
    (w_qkv, b_qkv, w_o, b_o, w_d, b_d) = params
    E, D = HIDDEN, HEAD_DIM
    scale = 1.0 / math.sqrt(D)

    # Wqkv output features are ordered (three, head, d). Pre-transpose to (in, out)
    # so the kernel computes x @ W in a single matmul, and fold the 1/sqrt(D)
    # softmax scale into the Q columns/bias (matmul is linear -> exact fold).
    wqkv_t = w_qkv.T.astype(jnp.float32)                       # (E, 3E)
    col_scale = jnp.concatenate([jnp.full((E,), scale, jnp.float32),
                                 jnp.ones((2 * E,), jnp.float32)])
    wqkv_t = wqkv_t * col_scale[None, :]
    bqkv = (b_qkv.astype(jnp.float32) * col_scale).reshape(1, 3 * E)

    wo_t = w_o.T.astype(jnp.float32)                           # (E, E), rows = (head, d)
    bo = b_o.astype(jnp.float32).reshape(1, E)
    wd_t = w_d.T.astype(jnp.float32)                           # (E, E)
    bd = b_d.astype(jnp.float32).reshape(1, E)
    return (wqkv_t, bqkv, wo_t, bo, wd_t, bd)


# ---- per-call wrapper ------------------------------------------------------
@jax.jit
def point_mae_attention(x, prepped):
    """x: (B, S, E) hidden states; prepped: output of prepare_params."""
    (wqkv_t, bqkv, wo_t, bo, wd_t, bd) = prepped
    B, S, E = x.shape
    x_flat = x.reshape(B * S, E)          # fold batch into sublanes (free reshape)

    vmem = pl.BlockSpec(memory_space=pltpu.MemorySpace.VMEM)
    out_flat = pl.pallas_call(
        partial(_mha_kernel, batch=B, seq=S, num_heads=NUM_HEADS),
        out_shape=jax.ShapeDtypeStruct((B * S, E), x.dtype),
        in_specs=[vmem] * 7,
        out_specs=vmem,
        scratch_shapes=[pltpu.VMEM((B * S, E), jnp.float32)],
    )(x_flat, wqkv_t, bqkv, wo_t, bo, wd_t, bd)
    return out_flat.reshape(B, S, E)


# ---- deterministic parameter init (PyTorch nn.Linear-style uniform) -------
def init_params(key):
    E = HIDDEN

    def uni(k, shape, fan_in):
        bound = 1.0 / math.sqrt(fan_in)
        return jax.random.uniform(k, shape, jnp.float32, -bound, bound)

    ks = jax.random.split(key, 6)
    w_qkv = uni(ks[0], (3 * E, E), E)   # FlashMHA.Wqkv
    b_qkv = uni(ks[1], (3 * E,), E)
    w_o = uni(ks[2], (E, E), E)         # FlashMHA.out_proj
    b_o = uni(ks[3], (E,), E)
    w_d = uni(ks[4], (E, E), E)         # PointMAESelfOutput.dense
    b_d = uni(ks[5], (E,), E)
    return (w_qkv, b_qkv, w_o, b_o, w_d, b_d)


# ---- pure-JAX reference (mirrors PointMAEAttention forward, mask-free) ----
def point_mae_attention_ref(x, params):
    (w_qkv, b_qkv, w_o, b_o, w_d, b_d) = params
    B, S, E = x.shape
    H, D = NUM_HEADS, HEAD_DIM
    hp = jax.lax.Precision.HIGHEST
    qkv = jnp.einsum('bse,fe->bsf', x, w_qkv, precision=hp) + b_qkv      # (B,S,3E)
    qkv = qkv.reshape(B, S, 3, H, D).transpose(2, 0, 3, 1, 4)            # (3,B,H,S,D)
    q, k, v = qkv[0], qkv[1], qkv[2]
    s = jnp.einsum('bhsd,bhtd->bhst', q, k, precision=hp) / math.sqrt(D)
    p = jax.nn.softmax(s, axis=-1)
    ctx = jnp.einsum('bhst,bhtd->bhsd', p, v, precision=hp)              # (B,H,S,D)
    ctx = ctx.transpose(0, 2, 1, 3).reshape(B, S, E)                     # (B,S,E)
    out = jnp.einsum('bse,fe->bsf', ctx, w_o, precision=hp) + b_o        # out_proj
    out = jnp.einsum('bse,fe->bsf', out, w_d, precision=hp) + b_d        # SelfOutput.dense
    return out


if __name__ == "__main__":
    key = jax.random.PRNGKey(0)
    k_x, k_p = jax.random.split(key)
    x = jax.random.normal(k_x, (BATCH, SEQ, HIDDEN), jnp.float32)
    params = init_params(k_p)

    # One-time weight re-layout (amortized across calls).
    prepped = jax.block_until_ready(prepare_params(params))

    out = point_mae_attention(x, prepped)
    out = jax.block_until_ready(out)

    ref = point_mae_attention_ref(x, params)
    assert out.shape == (BATCH, SEQ, HIDDEN), out.shape
    max_err = float(jnp.max(jnp.abs(out - ref)))
    assert jnp.allclose(out, ref, rtol=1e-3, atol=1e-3), max_err
    print("KERNEL_OK")
</pallas_src>

<mosaic_0001>
module attributes {stable_mosaic.version = 11 : i64} {
  func.func @_mha_kernel(%arg0: memref<32x128xf32, #tpu.memory_space<vmem>>, %arg1: memref<128x384xf32, #tpu.memory_space<vmem>>, %arg2: memref<1x384xf32, #tpu.memory_space<vmem>>, %arg3: memref<128x128xf32, #tpu.memory_space<vmem>>, %arg4: memref<1x128xf32, #tpu.memory_space<vmem>>, %arg5: memref<128x128xf32, #tpu.memory_space<vmem>>, %arg6: memref<1x128xf32, #tpu.memory_space<vmem>>, %arg7: memref<32x128xf32, #tpu.memory_space<vmem>>, %arg8: memref<32x128xf32, #tpu.memory_space<vmem>>) attributes {dimension_semantics = [], scalar_prefetch = 0 : i64, scratch_operands = 1 : i64, tpu.core_type = #tpu.core_type<tc>} {
    %c0 = arith.constant 0 : index
    %c0_0 = arith.constant 0 : index
    %0 = vector.load %arg0[%c0, %c0_0] : memref<32x128xf32, #tpu.memory_space<vmem>>, vector<32x128xf32>
    %c0_1 = arith.constant 0 : index
    %c0_2 = arith.constant 0 : index
    %1 = vector.load %arg1[%c0_1, %c0_2] : memref<128x384xf32, #tpu.memory_space<vmem>>, vector<128x384xf32>
    %cst = arith.constant dense<0.000000e+00> : vector<32x384xf32>
    %2 = tpu.matmul %0, %1, %cst {dimension_numbers = #tpu.dot_dimension_numbers<[1], [0], [0], [1], [0, 0, 1, 1], [], []>} : vector<32x128xf32>, vector<128x384xf32>, vector<32x384xf32> -> vector<32x384xf32>
    %c0_3 = arith.constant 0 : index
    %c0_4 = arith.constant 0 : index
    %3 = vector.load %arg2[%c0_3, %c0_4] : memref<1x384xf32, #tpu.memory_space<vmem>>, vector<1x384xf32>
    %4 = vector.broadcast %3 : vector<1x384xf32> to vector<32x384xf32>
    %5 = arith.addf %2, %4 : vector<32x384xf32>
    %6 = vector.extract_strided_slice %5 {offsets = [0, 0], sizes = [32, 128], strides = [1, 1]} : vector<32x384xf32> to vector<32x128xf32>
    %7 = vector.extract_strided_slice %5 {offsets = [0, 128], sizes = [32, 128], strides = [1, 1]} : vector<32x384xf32> to vector<32x128xf32>
    %8 = vector.extract_strided_slice %5 {offsets = [0, 256], sizes = [32, 128], strides = [1, 1]} : vector<32x384xf32> to vector<32x128xf32>
    %9 = vector.extract_strided_slice %6 {offsets = [0, 0], sizes = [16, 32], strides = [1, 1]} : vector<32x128xf32> to vector<16x32xf32>
    %10 = vector.extract_strided_slice %7 {offsets = [0, 0], sizes = [16, 32], strides = [1, 1]} : vector<32x128xf32> to vector<16x32xf32>
    %cst_5 = arith.constant dense<0.000000e+00> : vector<16x16xf32>
    %11 = tpu.matmul %9, %10, %cst_5 {dimension_numbers = #tpu.dot_dimension_numbers<[1], [1], [0], [0], [0, 0, 1, 0], [], []>} : vector<16x32xf32>, vector<16x32xf32>, vector<16x16xf32> -> vector<16x16xf32>
    %12 = vector.extract_strided_slice %6 {offsets = [0, 32], sizes = [16, 32], strides = [1, 1]} : vector<32x128xf32> to vector<16x32xf32>
    %13 = vector.extract_strided_slice %7 {offsets = [0, 32], sizes = [16, 32], strides = [1, 1]} : vector<32x128xf32> to vector<16x32xf32>
    %cst_6 = arith.constant dense<0.000000e+00> : vector<16x16xf32>
    %14 = tpu.matmul %12, %13, %cst_6 {dimension_numbers = #tpu.dot_dimension_numbers<[1], [1], [0], [0], [0, 0, 1, 0], [], []>} : vector<16x32xf32>, vector<16x32xf32>, vector<16x16xf32> -> vector<16x16xf32>
    %15 = vector.extract_strided_slice %6 {offsets = [0, 64], sizes = [16, 32], strides = [1, 1]} : vector<32x128xf32> to vector<16x32xf32>
    %16 = vector.extract_strided_slice %7 {offsets = [0, 64], sizes = [16, 32], strides = [1, 1]} : vector<32x128xf32> to vector<16x32xf32>
    %cst_7 = arith.constant dense<0.000000e+00> : vector<16x16xf32>
    %17 = tpu.matmul %15, %16, %cst_7 {dimension_numbers = #tpu.dot_dimension_numbers<[1], [1], [0], [0], [0, 0, 1, 0], [], []>} : vector<16x32xf32>, vector<16x32xf32>, vector<16x16xf32> -> vector<16x16xf32>
    %18 = vector.extract_strided_slice %6 {offsets = [0, 96], sizes = [16, 32], strides = [1, 1]} : vector<32x128xf32> to vector<16x32xf32>
    %19 = vector.extract_strided_slice %7 {offsets = [0, 96], sizes = [16, 32], strides = [1, 1]} : vector<32x128xf32> to vector<16x32xf32>
    %cst_8 = arith.constant dense<0.000000e+00> : vector<16x16xf32>
    %20 = tpu.matmul %18, %19, %cst_8 {dimension_numbers = #tpu.dot_dimension_numbers<[1], [1], [0], [0], [0, 0, 1, 0], [], []>} : vector<16x32xf32>, vector<16x32xf32>, vector<16x16xf32> -> vector<16x16xf32>
    %21 = vector.extract_strided_slice %6 {offsets = [16, 0], sizes = [16, 32], strides = [1, 1]} : vector<32x128xf32> to vector<16x32xf32>
    %22 = vector.extract_strided_slice %7 {offsets = [16, 0], sizes = [16, 32], strides = [1, 1]} : vector<32x128xf32> to vector<16x32xf32>
    %cst_9 = arith.constant dense<0.000000e+00> : vector<16x16xf32>
    %23 = tpu.matmul %21, %22, %cst_9 {dimension_numbers = #tpu.dot_dimension_numbers<[1], [1], [0], [0], [0, 0, 1, 0], [], []>} : vector<16x32xf32>, vector<16x32xf32>, vector<16x16xf32> -> vector<16x16xf32>
    %24 = vector.extract_strided_slice %6 {offsets = [16, 32], sizes = [16, 32], strides = [1, 1]} : vector<32x128xf32> to vector<16x32xf32>
    %25 = vector.extract_strided_slice %7 {offsets = [16, 32], sizes = [16, 32], strides = [1, 1]} : vector<32x128xf32> to vector<16x32xf32>
    %cst_10 = arith.constant dense<0.000000e+00> : vector<16x16xf32>
    %26 = tpu.matmul %24, %25, %cst_10 {dimension_numbers = #tpu.dot_dimension_numbers<[1], [1], [0], [0], [0, 0, 1, 0], [], []>} : vector<16x32xf32>, vector<16x32xf32>, vector<16x16xf32> -> vector<16x16xf32>
    %27 = vector.extract_strided_slice %6 {offsets = [16, 64], sizes = [16, 32], strides = [1, 1]} : vector<32x128xf32> to vector<16x32xf32>
    %28 = vector.extract_strided_slice %7 {offsets = [16, 64], sizes = [16, 32], strides = [1, 1]} : vector<32x128xf32> to vector<16x32xf32>
    %cst_11 = arith.constant dense<0.000000e+00> : vector<16x16xf32>
    %29 = tpu.matmul %27, %28, %cst_11 {dimension_numbers = #tpu.dot_dimension_numbers<[1], [1], [0], [0], [0, 0, 1, 0], [], []>} : vector<16x32xf32>, vector<16x32xf32>, vector<16x16xf32> -> vector<16x16xf32>
    %30 = vector.extract_strided_slice %6 {offsets = [16, 96], sizes = [16, 32], strides = [1, 1]} : vector<32x128xf32> to vector<16x32xf32>
    %31 = vector.extract_strided_slice %7 {offsets = [16, 96], sizes = [16, 32], strides = [1, 1]} : vector<32x128xf32> to vector<16x32xf32>
    %cst_12 = arith.constant dense<0.000000e+00> : vector<16x16xf32>
    %32 = tpu.matmul %30, %31, %cst_12 {dimension_numbers = #tpu.dot_dimension_numbers<[1], [1], [0], [0], [0, 0, 1, 0], [], []>} : vector<16x32xf32>, vector<16x32xf32>, vector<16x16xf32> -> vector<16x16xf32>
    %33 = tpu.concatenate %11, %14, %17, %20, %23, %26, %29, %32 in 0 : vector<16x16xf32>, vector<16x16xf32>, vector<16x16xf32>, vector<16x16xf32>, vector<16x16xf32>, vector<16x16xf32>, vector<16x16xf32>, vector<16x16xf32> -> vector<128x16xf32>
    %cst_13 = arith.constant dense<0xFF800000> : vector<128xf32>
    %34 = vector.multi_reduction <maximumf>, %33, %cst_13 [1] : vector<128x16xf32> to vector<128xf32>
    %35 = vector.shape_cast %34 : vector<128xf32> to vector<128x1xf32>
    %36 = vector.broadcast %35 : vector<128x1xf32> to vector<128x16xf32>
    %37 = arith.subf %33, %36 : vector<128x16xf32>
    %38 = math.exp %37 : vector<128x16xf32>
    %cst_14 = arith.constant dense<0.000000e+00> : vector<128xf32>
    %39 = vector.multi_reduction <add>, %38, %cst_14 [1] : vector<128x16xf32> to vector<128xf32>
    %40 = vector.shape_cast %39 : vector<128xf32> to vector<128x1xf32>
    %41 = tpu.reciprocal %40 : vector<128x1xf32> -> vector<128x1xf32>
    %42 = vector.broadcast %41 : vector<128x1xf32> to vector<128x16xf32>
    %43 = arith.mulf %38, %42 : vector<128x16xf32>
    %44 = vector.extract_strided_slice %43 {offsets = [0, 0], sizes = [16, 16], strides = [1, 1]} : vector<128x16xf32> to vector<16x16xf32>
    %45 = vector.extract_strided_slice %8 {offsets = [0, 0], sizes = [16, 32], strides = [1, 1]} : vector<32x128xf32> to vector<16x32xf32>
    %cst_15 = arith.constant dense<0.000000e+00> : vector<16x32xf32>
    %46 = tpu.matmul %44, %45, %cst_15 {dimension_numbers = #tpu.dot_dimension_numbers<[1], [0], [0], [1], [0, 0, 1, 1], [], []>} : vector<16x16xf32>, vector<16x32xf32>, vector<16x32xf32> -> vector<16x32xf32>
    %c0_16 = arith.constant 0 : index
    %c0_17 = arith.constant 0 : index
    %47 = vector.load %arg8[%c0_16, %c0_17] : memref<32x128xf32, #tpu.memory_space<vmem>>, vector<16x32xf32>
    tpu.vector_store %arg8[%c0_16, %c0_17], %46 {strides = array<i32>} : memref<32x128xf32, #tpu.memory_space<vmem>>, vector<16x32xf32>,
    %48 = vector.extract_strided_slice %43 {offsets = [16, 0], sizes = [16, 16], strides = [1, 1]} : vector<128x16xf32> to vector<16x16xf32>
    %49 = vector.extract_strided_slice %8 {offsets = [0, 32], sizes = [16, 32], strides = [1, 1]} : vector<32x128xf32> to vector<16x32xf32>
    %cst_18 = arith.constant dense<0.000000e+00> : vector<16x32xf32>
    %50 = tpu.matmul %48, %49, %cst_18 {dimension_numbers = #tpu.dot_dimension_numbers<[1], [0], [0], [1], [0, 0, 1, 1], [], []>} : vector<16x16xf32>, vector<16x32xf32>, vector<16x32xf32> -> vector<16x32xf32>
    %c0_19 = arith.constant 0 : index
    %c32 = arith.constant 32 : index
    %51 = vector.load %arg8[%c0_19, %c32] : memref<32x128xf32, #tpu.memory_space<vmem>>, vector<16x32xf32>
    tpu.vector_store %arg8[%c0_19, %c32], %50 {strides = array<i32>} : memref<32x128xf32, #tpu.memory_space<vmem>>, vector<16x32xf32>,
    %52 = vector.extract_strided_slice %43 {offsets = [32, 0], sizes = [16, 16], strides = [1, 1]} : vector<128x16xf32> to vector<16x16xf32>
    %53 = vector.extract_strided_slice %8 {offsets = [0, 64], sizes = [16, 32], strides = [1, 1]} : vector<32x128xf32> to vector<16x32xf32>
    %cst_20 = arith.constant dense<0.000000e+00> : vector<16x32xf32>
    %54 = tpu.matmul %52, %53, %cst_20 {dimension_numbers = #tpu.dot_dimension_numbers<[1], [0], [0], [1], [0, 0, 1, 1], [], []>} : vector<16x16xf32>, vector<16x32xf32>, vector<16x32xf32> -> vector<16x32xf32>
    %c0_21 = arith.constant 0 : index
    %c64 = arith.constant 64 : index
    %55 = vector.load %arg8[%c0_21, %c64] : memref<32x128xf32, #tpu.memory_space<vmem>>, vector<16x32xf32>
    tpu.vector_store %arg8[%c0_21, %c64], %54 {strides = array<i32>} : memref<32x128xf32, #tpu.memory_space<vmem>>, vector<16x32xf32>,
    %56 = vector.extract_strided_slice %43 {offsets = [48, 0], sizes = [16, 16], strides = [1, 1]} : vector<128x16xf32> to vector<16x16xf32>
    %57 = vector.extract_strided_slice %8 {offsets = [0, 96], sizes = [16, 32], strides = [1, 1]} : vector<32x128xf32> to vector<16x32xf32>
    %cst_22 = arith.constant dense<0.000000e+00> : vector<16x32xf32>
    %58 = tpu.matmul %56, %57, %cst_22 {dimension_numbers = #tpu.dot_dimension_numbers<[1], [0], [0], [1], [0, 0, 1, 1], [], []>} : vector<16x16xf32>, vector<16x32xf32>, vector<16x32xf32> -> vector<16x32xf32>
    %c0_23 = arith.constant 0 : index
    %c96 = arith.constant 96 : index
    %59 = vector.load %arg8[%c0_23, %c96] : memref<32x128xf32, #tpu.memory_space<vmem>>, vector<16x32xf32>
    tpu.vector_store %arg8[%c0_23, %c96], %58 {strides = array<i32>} : memref<32x128xf32, #tpu.memory_space<vmem>>, vector<16x32xf32>,
    %60 = vector.extract_strided_slice %43 {offsets = [64, 0], sizes = [16, 16], strides = [1, 1]} : vector<128x16xf32> to vector<16x16xf32>
    %61 = vector.extract_strided_slice %8 {offsets = [16, 0], sizes = [16, 32], strides = [1, 1]} : vector<32x128xf32> to vector<16x32xf32>
    %cst_24 = arith.constant dense<0.000000e+00> : vector<16x32xf32>
    %62 = tpu.matmul %60, %61, %cst_24 {dimension_numbers = #tpu.dot_dimension_numbers<[1], [0], [0], [1], [0, 0, 1, 1], [], []>} : vector<16x16xf32>, vector<16x32xf32>, vector<16x32xf32> -> vector<16x32xf32>
    %c16 = arith.constant 16 : index
    %c0_25 = arith.constant 0 : index
    %63 = vector.load %arg8[%c16, %c0_25] : memref<32x128xf32, #tpu.memory_space<vmem>>, vector<16x32xf32>
    tpu.vector_store %arg8[%c16, %c0_25], %62 {strides = array<i32>} : memref<32x128xf32, #tpu.memory_space<vmem>>, vector<16x32xf32>,
    %64 = vector.extract_strided_slice %43 {offsets = [80, 0], sizes = [16, 16], strides = [1, 1]} : vector<128x16xf32> to vector<16x16xf32>
    %65 = vector.extract_strided_slice %8 {offsets = [16, 32], sizes = [16, 32], strides = [1, 1]} : vector<32x128xf32> to vector<16x32xf32>
    %cst_26 = arith.constant dense<0.000000e+00> : vector<16x32xf32>
    %66 = tpu.matmul %64, %65, %cst_26 {dimension_numbers = #tpu.dot_dimension_numbers<[1], [0], [0], [1], [0, 0, 1, 1], [], []>} : vector<16x16xf32>, vector<16x32xf32>, vector<16x32xf32> -> vector<16x32xf32>
    %c16_27 = arith.constant 16 : index
    %c32_28 = arith.constant 32 : index
    %67 = vector.load %arg8[%c16_27, %c32_28] : memref<32x128xf32, #tpu.memory_space<vmem>>, vector<16x32xf32>
    tpu.vector_store %arg8[%c16_27, %c32_28], %66 {strides = array<i32>} : memref<32x128xf32, #tpu.memory_space<vmem>>, vector<16x32xf32>,
    %68 = vector.extract_strided_slice %43 {offsets = [96, 0], sizes = [16, 16], strides = [1, 1]} : vector<128x16xf32> to vector<16x16xf32>
    %69 = vector.extract_strided_slice %8 {offsets = [16, 64], sizes = [16, 32], strides = [1, 1]} : vector<32x128xf32> to vector<16x32xf32>
    %cst_29 = arith.constant dense<0.000000e+00> : vector<16x32xf32>
    %70 = tpu.matmul %68, %69, %cst_29 {dimension_numbers = #tpu.dot_dimension_numbers<[1], [0], [0], [1], [0, 0, 1, 1], [], []>} : vector<16x16xf32>, vector<16x32xf32>, vector<16x32xf32> -> vector<16x32xf32>
    %c16_30 = arith.constant 16 : index
    %c64_31 = arith.constant 64 : index
    %71 = vector.load %arg8[%c16_30, %c64_31] : memref<32x128xf32, #tpu.memory_space<vmem>>, vector<16x32xf32>
    tpu.vector_store %arg8[%c16_30, %c64_31], %70 {strides = array<i32>} : memref<32x128xf32, #tpu.memory_space<vmem>>, vector<16x32xf32>,
    %72 = vector.extract_strided_slice %43 {offsets = [112, 0], sizes = [16, 16], strides = [1, 1]} : vector<128x16xf32> to vector<16x16xf32>
    %73 = vector.extract_strided_slice %8 {offsets = [16, 96], sizes = [16, 32], strides = [1, 1]} : vector<32x128xf32> to vector<16x32xf32>
    %cst_32 = arith.constant dense<0.000000e+00> : vector<16x32xf32>
    %74 = tpu.matmul %72, %73, %cst_32 {dimension_numbers = #tpu.dot_dimension_numbers<[1], [0], [0], [1], [0, 0, 1, 1], [], []>} : vector<16x16xf32>, vector<16x32xf32>, vector<16x32xf32> -> vector<16x32xf32>
    %c16_33 = arith.constant 16 : index
    %c96_34 = arith.constant 96 : index
    %75 = vector.load %arg8[%c16_33, %c96_34] : memref<32x128xf32, #tpu.memory_space<vmem>>, vector<16x32xf32>
    tpu.vector_store %arg8[%c16_33, %c96_34], %74 {strides = array<i32>} : memref<32x128xf32, #tpu.memory_space<vmem>>, vector<16x32xf32>,
    %c0_35 = arith.constant 0 : index
    %c0_36 = arith.constant 0 : index
    %76 = vector.load %arg8[%c0_35, %c0_36] : memref<32x128xf32, #tpu.memory_space<vmem>>, vector<32x128xf32>
    %c0_37 = arith.constant 0 : index
    %c0_38 = arith.constant 0 : index
    %77 = vector.load %arg3[%c0_37, %c0_38] : memref<128x128xf32, #tpu.memory_space<vmem>>, vector<128x128xf32>
    %cst_39 = arith.constant dense<0.000000e+00> : vector<32x128xf32>
    %78 = tpu.matmul %76, %77, %cst_39 {dimension_numbers = #tpu.dot_dimension_numbers<[1], [0], [0], [1], [0, 0, 1, 1], [], []>} : vector<32x128xf32>, vector<128x128xf32>, vector<32x128xf32> -> vector<32x128xf32>
    %c0_40 = arith.constant 0 : index
    %c0_41 = arith.constant 0 : index
    %79 = vector.load %arg4[%c0_40, %c0_41] : memref<1x128xf32, #tpu.memory_space<vmem>>, vector<1x128xf32>
    %80 = vector.broadcast %79 : vector<1x128xf32> to vector<32x128xf32>
    %81 = arith.addf %78, %80 : vector<32x128xf32>
    %c0_42 = arith.constant 0 : index
    %c0_43 = arith.constant 0 : index
    %82 = vector.load %arg5[%c0_42, %c0_43] : memref<128x128xf32, #tpu.memory_space<vmem>>, vector<128x128xf32>
    %cst_44 = arith.constant dense<0.000000e+00> : vector<32x128xf32>
    %83 = tpu.matmul %81, %82, %cst_44 {dimension_numbers = #tpu.dot_dimension_numbers<[1], [0], [0], [1], [0, 0, 1, 1], [], []>} : vector<32x128xf32>, vector<128x128xf32>, vector<32x128xf32> -> vector<32x128xf32>
    %c0_45 = arith.constant 0 : index
    %c0_46 = arith.constant 0 : index
    %84 = vector.load %arg6[%c0_45, %c0_46] : memref<1x128xf32, #tpu.memory_space<vmem>>, vector<1x128xf32>
    %85 = vector.broadcast %84 : vector<1x128xf32> to vector<32x128xf32>
    %86 = arith.addf %83, %85 : vector<32x128xf32>
    %c0_47 = arith.constant 0 : index
    %c0_48 = arith.constant 0 : index
    %87 = vector.load %arg7[%c0_47, %c0_48] : memref<32x128xf32, #tpu.memory_space<vmem>>, vector<32x128xf32>
    tpu.vector_store %arg7[%c0_47, %c0_48], %86 {strides = array<i32>} : memref<32x128xf32, #tpu.memory_space<vmem>>, vector<32x128xf32>,
    return
  }
}

</mosaic_0001>

<llo_original>
// kernel: point_mae_attention.1
$region0: #{point_mae_attention.1}
  #allocation0 [shape = 'u32[]', space=smem, size = 0x4, offset = 0x4, fixed_abs, tag = 'smem constant byte address 0x4 - core index']
  #allocation1 [shape = 'u32[72,128]{1,0:T(1,128)}', space=vmem, size = 0x9000, scoped, tag = 'internal scratch']
  #allocation2 [shape = 'f32[32,128]{1,0:T(8,128)}', space=vmem, size = 0x4000, scoped, tag = 'scratch operand']
  %s0 = inlined_call_operand.hbm [shape: f32[32,128], index: 0, kind: input, shape index: {}]
  %s1 = inlined_call_operand.hbm [shape: f32[128,384], index: 1, kind: input, shape index: {}]
  %s2 = inlined_call_operand.hbm [shape: f32[1,384], index: 2, kind: input, shape index: {}]
  %s3 = inlined_call_operand.hbm [shape: f32[128,128], index: 3, kind: input, shape index: {}]
  %s4 = inlined_call_operand.vmem [shape: f32[1,128], index: 4, kind: input, shape index: {}]
  %s5 = inlined_call_operand.hbm [shape: f32[128,128], index: 5, kind: input, shape index: {}]
  %s6 = inlined_call_operand.vmem [shape: f32[1,128], index: 6, kind: input, shape index: {}]
  %s7 = inlined_call_operand.hbm [shape: f32[32,128], index: 7, kind: output, shape index: {}]
  %s8 = sld [smem:[#allocation0]]
  $region58: #{point_mae_attention.1} parent=0
    _
  %s10 = ssub.s32 1, %s8
  %s11 = scalar_select 0, %s10, %s8
  $region1: #{point_mae_attention.1} parent=0
    #allocation3 [shape = 'u8[16384]{0}', space=vmem, size = 0x4000, scoped, tag = 'input window, operand 0, single buffered']
    #allocation4 [shape = 's32[1]{0}', space=sflag, size = 0x4, scoped, tag = 'scoped memory for point_mae_attention.1']
    #allocation5 [shape = 's32[1]{0}', space=sflag, size = 0x4, scoped, tag = 'scoped memory for point_mae_attention.1']
    #allocation6 [shape = 'u8[196608]{0}', space=vmem, size = 0x30000, scoped, tag = 'input window, operand 1, single buffered']
    #allocation7 [shape = 's32[1]{0}', space=sflag, size = 0x4, scoped, tag = 'scoped memory for point_mae_attention.1']
    #allocation8 [shape = 'u8[1536]{0}', space=vmem, size = 0x800, scoped, tag = 'input window, operand 2, single buffered']
    #allocation9 [shape = 'u8[65536]{0}', space=vmem, size = 0x10000, scoped, tag = 'input window, operand 3, single buffered']
    #allocation10 [shape = 's32[1]{0}', space=sflag, size = 0x4, scoped, tag = 'scoped memory for point_mae_attention.1']
    #allocation11 [shape = 'u8[65536]{0}', space=vmem, size = 0x10000, scoped, tag = 'input window, operand 5, single buffered']
    #allocation12 [shape = 'u8[16384]{0}', space=vmem, size = 0x4000, scoped, tag = 'output window, operand 0, single buffered']
    %12 = vsyncpa [#allocation4], 0
    %13 = vsyncpa [#allocation7], 0
    %14 = vsyncpa [#allocation10], 0
    %15 = vsyncpa [#allocation5], 0
    // Predicated region
    $region2: #{point_mae_attention.1} parent=1 // pred_check
      _
    $region3: #{point_mae_attention.1} parent=1 // pred_check_branch
      %17 = sbr.rel (0) target = $region5
    $region4: #{point_mae_attention.1} parent=1 // pred_region
      %19 = vsyncadd [#allocation4], 0
      %s20 = sshll.u32 %s0, 4
      %s21 = int_to_ptr.hbm [resolvable:$true] %s20
      %s22 = sshll.u32 [#allocation3], 4
      %s23 = int_to_ptr.vmem [resolvable:$true] %s22
      %28 = dma.hbm_to_vmem [thread:$0]  %s21, 512, %s23, [#allocation4], 128, 128, 8
    $region5: #{point_mae_attention.1} parent=1 // pred_fallthru
      _
    // Predicated region
    $region6: #{point_mae_attention.1} parent=1 // pred_check
      _
    $region7: #{point_mae_attention.1} parent=1 // pred_check_branch
      %30 = sbr.rel (0) target = $region9
    $region8: #{point_mae_attention.1} parent=1 // pred_region
      %32 = vsyncadd [#allocation7], 0
      %s33 = sshll.u32 %s1, 4
      %s34 = int_to_ptr.hbm [resolvable:$true] %s33
      %s35 = sshll.u32 [#allocation6], 4
      %s36 = int_to_ptr.vmem [resolvable:$true] %s35
      %41 = dma.hbm_to_vmem [thread:$0]  %s34, 6144, %s36, [#allocation7], 384, 384, 24
    $region9: #{point_mae_attention.1} parent=1 // pred_fallthru
      _
    // Predicated region
    $region10: #{point_mae_attention.1} parent=1 // pred_check
      _
    $region11: #{point_mae_attention.1} parent=1 // pred_check_branch
      %43 = sbr.rel (0) target = $region13
    $region12: #{point_mae_attention.1} parent=1 // pred_region
      %45 = vsyncadd [#allocation7], 0
      %s47 = sshll.u32 %s2, 4
      %s48 = int_to_ptr.hbm [resolvable:$true] %s47
      %s49 = sshll.u32 [#allocation8], 4
      %s50 = int_to_ptr.vmem [resolvable:$true] %s49
      %52 = dma.hbm_to_vmem [thread:$0]  %s48, 48, %s50, [#allocation7]
    $region13: #{point_mae_attention.1} parent=1 // pred_fallthru
      _
    // Predicated region
    $region14: #{point_mae_attention.1} parent=1 // pred_check
      _
    $region15: #{point_mae_attention.1} parent=1 // pred_check_branch
      %54 = sbr.rel (0) target = $region17
    $region16: #{point_mae_attention.1} parent=1 // pred_region
      %56 = vsyncadd [#allocation10], 0
      %s57 = sshll.u32 %s3, 4
      %s58 = int_to_ptr.hbm [resolvable:$true] %s57
      %s59 = sshll.u32 [#allocation9], 4
      %s60 = int_to_ptr.vmem [resolvable:$true] %s59
      %65 = dma.hbm_to_vmem [thread:$0]  %s58, 2048, %s60, [#allocation10], 128, 128, 8
    $region17: #{point_mae_attention.1} parent=1 // pred_fallthru
      _
    // Predicated region
    $region18: #{point_mae_attention.1} parent=1 // pred_check
      _
    $region19: #{point_mae_attention.1} parent=1 // pred_check_branch
      %67 = sbr.rel (0) target = $region21
    $region20: #{point_mae_attention.1} parent=1 // pred_region
      _
    $region21: #{point_mae_attention.1} parent=1 // pred_fallthru
      _
    // Predicated region
    $region22: #{point_mae_attention.1} parent=1 // pred_check
      _
    $region23: #{point_mae_attention.1} parent=1 // pred_check_branch
      %69 = sbr.rel (0) target = $region25
    $region24: #{point_mae_attention.1} parent=1 // pred_region
      %71 = vsyncadd [#allocation10], 0
      %s72 = sshll.u32 %s5, 4
      %s73 = int_to_ptr.hbm [resolvable:$true] %s72
      %s74 = sshll.u32 [#allocation11], 4
      %s75 = int_to_ptr.vmem [resolvable:$true] %s74
      %80 = dma.hbm_to_vmem [thread:$0]  %s73, 2048, %s75, [#allocation10], 128, 128, 8
    $region25: #{point_mae_attention.1} parent=1 // pred_fallthru
      _
    // Predicated region
    $region26: #{point_mae_attention.1} parent=1 // pred_check
      _
    $region27: #{point_mae_attention.1} parent=1 // pred_check_branch
      %82 = sbr.rel (0) target = $region29
    $region28: #{point_mae_attention.1} parent=1 // pred_region
      _
    $region29: #{point_mae_attention.1} parent=1 // pred_fallthru
      _
    // Predicated region
    $region30: #{point_mae_attention.1} parent=1 // pred_check
      _
    $region31: #{point_mae_attention.1} parent=1 // pred_check_branch
      %84 = sbr.rel (0) target = $region33
    $region32: #{point_mae_attention.1} parent=1 // pred_region
      %86 = dma.done [#allocation4], 512
    $region33: #{point_mae_attention.1} parent=1 // pred_fallthru
      _
    // Predicated region
    $region34: #{point_mae_attention.1} parent=1 // pred_check
      _
    $region35: #{point_mae_attention.1} parent=1 // pred_check_branch
      %88 = sbr.rel (0) target = $region37
    $region36: #{point_mae_attention.1} parent=1 // pred_region
      %90 = dma.done [#allocation7], 6144
    $region37: #{point_mae_attention.1} parent=1 // pred_fallthru
      _
    // Predicated region
    $region38: #{point_mae_attention.1} parent=1 // pred_check
      _
    $region39: #{point_mae_attention.1} parent=1 // pred_check_branch
      %92 = sbr.rel (0) target = $region41
    $region40: #{point_mae_attention.1} parent=1 // pred_region
      %94 = dma.done [#allocation7], 48
    $region41: #{point_mae_attention.1} parent=1 // pred_fallthru
      _
    // Predicated region
    $region42: #{point_mae_attention.1} parent=1 // pred_check
      _
    $region43: #{point_mae_attention.1} parent=1 // pred_check_branch
      %96 = sbr.rel (0) target = $region45
    $region44: #{point_mae_attention.1} parent=1 // pred_region
      %98 = dma.done [#allocation10], 2048
    $region45: #{point_mae_attention.1} parent=1 // pred_fallthru
      _
    // Predicated region
    $region46: #{point_mae_attention.1} parent=1 // pred_check
      _
    $region47: #{point_mae_attention.1} parent=1 // pred_check_branch
      %100 = sbr.rel (0) target = $region49
    $region48: #{point_mae_attention.1} parent=1 // pred_region
      %102 = dma.done [#allocation10], 2048
    $region49: #{point_mae_attention.1} parent=1 // pred_fallthru
      _
    %v103 = vld [vmem:[#allocation3] sm:$0xff]
    %v104 = vld [vmem:[#allocation3 + $0x8] sm:$0xff]
    %v105 = vld [vmem:[#allocation3 + $0x10] sm:$0xff]
    %v106 = vld [vmem:[#allocation3 + $0x18] sm:$0xff]
    %v107 = vld [vmem:[#allocation6] sm:$0xff]
    %v108 = vld [vmem:[#allocation6 + $0x8] sm:$0xff]
    %v109 = vld [vmem:[#allocation6 + $0x10] sm:$0xff]
    %v110 = vld [vmem:[#allocation6 + $0x18] sm:$0xff]
    %v111 = vld [vmem:[#allocation6 + $0x20] sm:$0xff]
    %v112 = vld [vmem:[#allocation6 + $0x28] sm:$0xff]
    %v113 = vld [vmem:[#allocation6 + $0x30] sm:$0xff]
    %v114 = vld [vmem:[#allocation6 + $0x38] sm:$0xff]
    %v115 = vld [vmem:[#allocation6 + $0x40] sm:$0xff]
    %v116 = vld [vmem:[#allocation6 + $0x48] sm:$0xff]
    %v117 = vld [vmem:[#allocation6 + $0x50] sm:$0xff]
    %v118 = vld [vmem:[#allocation6 + $0x58] sm:$0xff]
    %v119 = vld [vmem:[#allocation6 + $0x60] sm:$0xff]
    %v120 = vld [vmem:[#allocation6 + $0x68] sm:$0xff]
    %v121 = vld [vmem:[#allocation6 + $0x70] sm:$0xff]
    %v122 = vld [vmem:[#allocation6 + $0x78] sm:$0xff]
    %v123 = vld [vmem:[#allocation6 + $0x80] sm:$0xff]
    %v124 = vld [vmem:[#allocation6 + $0x88] sm:$0xff]
    %v125 = vld [vmem:[#allocation6 + $0x90] sm:$0xff]
    %v126 = vld [vmem:[#allocation6 + $0x98] sm:$0xff]
    %v127 = vld [vmem:[#allocation6 + $0xa0] sm:$0xff]
    %v128 = vld [vmem:[#allocation6 + $0xa8] sm:$0xff]
    %v129 = vld [vmem:[#allocation6 + $0xb0] sm:$0xff]
    %v130 = vld [vmem:[#allocation6 + $0xb8] sm:$0xff]
    %v131 = vld [vmem:[#allocation6 + $0xc0] sm:$0xff]
    %v132 = vld [vmem:[#allocation6 + $0xc8] sm:$0xff]
    %v133 = vld [vmem:[#allocation6 + $0xd0] sm:$0xff]
    %v134 = vld [vmem:[#allocation6 + $0xd8] sm:$0xff]
    %v135 = vld [vmem:[#allocation6 + $0xe0] sm:$0xff]
    %v136 = vld [vmem:[#allocation6 + $0xe8] sm:$0xff]
    %v137 = vld [vmem:[#allocation6 + $0xf0] sm:$0xff]
    %v138 = vld [vmem:[#allocation6 + $0xf8] sm:$0xff]
    %v139 = vld [vmem:[#allocation6 + $0x100] sm:$0xff]
    %v140 = vld [vmem:[#allocation6 + $0x108] sm:$0xff]
    %v141 = vld [vmem:[#allocation6 + $0x110] sm:$0xff]
    %v142 = vld [vmem:[#allocation6 + $0x118] sm:$0xff]
    %v143 = vld [vmem:[#allocation6 + $0x120] sm:$0xff]
    %v144 = vld [vmem:[#allocation6 + $0x128] sm:$0xff]
    %v145 = vld [vmem:[#allocation6 + $0x130] sm:$0xff]
    %v146 = vld [vmem:[#allocation6 + $0x138] sm:$0xff]
    %v147 = vld [vmem:[#allocation6 + $0x140] sm:$0xff]
    %v148 = vld [vmem:[#allocation6 + $0x148] sm:$0xff]
    %v149 = vld [vmem:[#allocation6 + $0x150] sm:$0xff]
    %v150 = vld [vmem:[#allocation6 + $0x158] sm:$0xff]
    %v151 = vld [vmem:[#allocation6 + $0x160] sm:$0xff]
    %v152 = vld [vmem:[#allocation6 + $0x168] sm:$0xff]
    %v153 = vld [vmem:[#allocation6 + $0x170] sm:$0xff]
    %v154 = vld [vmem:[#allocation6 + $0x178] sm:$0xff]
    %v155 = vld [vmem:[#allocation8] sm:$0x7]
    %v157 = vperm.slane %v155, 0
    %v158 = vperm.slane %v155, 1
    %v159 = vperm.slane %v155, 2
    %163 = vmatpush.msra.mxu0 %v152
    %164 = vmatpush.msra.mxu0 %v149
    %165 = vmatpush.msra.mxu0 %v146
    %166 = vmatpush.msra.mxu0 %v143
    %167 = vmatpush.msra.mxu0 %v140
    %168 = vmatpush.msra.mxu0 %v137
    %169 = vmatpush.msra.mxu0 %v134
    %170 = vmatpush.msra.mxu0 %v131
    %171 = vmatpush.msra.mxu0 %v128
    %172 = vmatpush.msra.mxu0 %v125
    %173 = vmatpush.msra.mxu0 %v122
    %174 = vmatpush.msra.mxu0 %v119
    %175 = vmatpush.msra.mxu0 %v116
    %176 = vmatpush.msra.mxu0 %v113
    %177 = vmatpush.msra.mxu0 %v110
    %178 = vmatpush.msra.mxu0 %v107
    %179 = vmatmul.f32.gmra.mxu0 %v103
    %v180 = vpop.f32.mrf.mxu0
    %v181 = vadd.f32 %v157, %v180
    %182 = vmatmul.f32.gmra.mxu0 %v104
    %v183 = vpop.f32.mrf.mxu0
    %v184 = vadd.f32 %v157, %v183
    %185 = vmatmul.f32.gmra.mxu0 %v105
    %v186 = vpop.f32.mrf.mxu0
    %v187 = vadd.f32 %v157, %v186
    %188 = vmatmul.f32.gmra.mxu0 %v106
    %v189 = vpop.f32.mrf.mxu0
    %v190 = vadd.f32 %v157, %v189
    %191 = vdwg.mxu0
    %192 = vmatpush.msra.mxu0 %v153
    %193 = vmatpush.msra.mxu0 %v150
    %194 = vmatpush.msra.mxu0 %v147
    %195 = vmatpush.msra.mxu0 %v144
    %196 = vmatpush.msra.mxu0 %v141
    %197 = vmatpush.msra.mxu0 %v138
    %198 = vmatpush.msra.mxu0 %v135
    %199 = vmatpush.msra.mxu0 %v132
    %200 = vmatpush.msra.mxu0 %v129
    %201 = vmatpush.msra.mxu0 %v126
    %202 = vmatpush.msra.mxu0 %v123
    %203 = vmatpush.msra.mxu0 %v120
    %204 = vmatpush.msra.mxu0 %v117
    %205 = vmatpush.msra.mxu0 %v114
    %206 = vmatpush.msra.mxu0 %v111
    %207 = vmatpush.msra.mxu0 %v108
    %208 = vmatmul.f32.gmra.mxu0 %v103
    %v209 = vpop.f32.mrf.mxu0
    %v210 = vadd.f32 %v158, %v209
    %211 = vmatmul.f32.gmra.mxu0 %v104
    %v212 = vpop.f32.mrf.mxu0
    %v213 = vadd.f32 %v158, %v212
    %214 = vmatmul.f32.gmra.mxu0 %v105
    %v215 = vpop.f32.mrf.mxu0
    %v216 = vadd.f32 %v158, %v215
    %217 = vmatmul.f32.gmra.mxu0 %v106
    %v218 = vpop.f32.mrf.mxu0
    %v219 = vadd.f32 %v158, %v218
    %220 = vdwg.mxu0
    %221 = vmatpush.msra.mxu0 %v154
    %222 = vmatpush.msra.mxu0 %v151
    %223 = vmatpush.msra.mxu0 %v148
    %224 = vmatpush.msra.mxu0 %v145
    %225 = vmatpush.msra.mxu0 %v142
    %226 = vmatpush.msra.mxu0 %v139
    %227 = vmatpush.msra.mxu0 %v136
    %228 = vmatpush.msra.mxu0 %v133
    %229 = vmatpush.msra.mxu0 %v130
    %230 = vmatpush.msra.mxu0 %v127
    %231 = vmatpush.msra.mxu0 %v124
    %232 = vmatpush.msra.mxu0 %v121
    %233 = vmatpush.msra.mxu0 %v118
    %234 = vmatpush.msra.mxu0 %v115
    %235 = vmatpush.msra.mxu0 %v112
    %236 = vmatpush.msra.mxu0 %v109
    %237 = vmatmul.f32.gmra.mxu0 %v103
    %v238 = vpop.f32.mrf.mxu0
    %v239 = vadd.f32 %v159, %v238
    %240 = vmatmul.f32.gmra.mxu0 %v104
    %v241 = vpop.f32.mrf.mxu0
    %v242 = vadd.f32 %v159, %v241
    %243 = vmatmul.f32.gmra.mxu0 %v105
    %v244 = vpop.f32.mrf.mxu0
    %v245 = vadd.f32 %v159, %v244
    %246 = vmatmul.f32.gmra.mxu0 %v106
    %v247 = vpop.f32.mrf.mxu0
    %v248 = vadd.f32 %v159, %v247
    %249 = vdwg.mxu0
    %vm250 = vcmask 261120
    %v252 = vsel %vm250, %v181, 0
    %v255 = vsel %vm250, %v184, 0
    %v258 = vsel %vm250, %v210, 0
    %v261 = vsel %vm250, %v213, 0
    %263 = vmatpush.xpose.msra.mxu0 0.0
    %264 = vmatpush.xpose.msra.mxu0 0.0
    %265 = vmatpush.xpose.msra.mxu0 0.0
    %266 = vmatpush.xpose.msra.mxu0 0.0
    %267 = vmatpush.xpose.msra.mxu0 0.0
    %268 = vmatpush.xpose.msra.mxu0 0.0
    %269 = vmatpush.xpose.msra.mxu0 0.0
    %270 = vmatpush.xpose.msra.mxu0 0.0
    %271 = vmatpush.xpose.msra.mxu0 0.0
    %272 = vmatpush.xpose.msra.mxu0 0.0
    %273 = vmatpush.xpose.msra.mxu0 0.0
    %274 = vmatpush.xpose.msra.mxu0 0.0
    %275 = vmatpush.xpose.msra.mxu0 0.0
    %276 = vmatpush.xpose.msra.mxu0 0.0
    %277 = vmatpush.xpose.msra.mxu0 %v261
    %278 = vmatpush.xpose.msra.mxu0 %v258
    %279 = vmatmul.f32.gmra.mxu0 %v252
    %v280 = vpop.f32.mrf.mxu0
    %v281 = vadd.f32 0.0, %v280
    %282 = vmatmul.f32.gmra.mxu0 %v255
    %v283 = vpop.f32.mrf.mxu0
    %v284 = vadd.f32 0.0, %v283
    %285 = vdwg.mxu0
    %286 = vrot.lane.b32.xlu0 %v181, 96
    %v287 = vpop.permute.xlu0 %286
    %288 = vrot.lane.b32.xlu0 %v184, 96
    %v289 = vpop.permute.xlu0 %288
    %290 = vrot.lane.b32.xlu0 %v210, 96
    %v291 = vpop.permute.xlu0 %290
    %292 = vrot.lane.b32.xlu0 %v213, 96
    %v293 = vpop.permute.xlu0 %292
    %v294 = vsel %vm250, %v287, 0
    %v296 = vsel %vm250, %v289, 0
    %v298 = vsel %vm250, %v291, 0
    %v300 = vsel %vm250, %v293, 0
    %302 = vmatpush.xpose.msra.mxu0 0.0
    %303 = vmatpush.xpose.msra.mxu0 0.0
    %304 = vmatpush.xpose.msra.mxu0 0.0
    %305 = vmatpush.xpose.msra.mxu0 0.0
    %306 = vmatpush.xpose.msra.mxu0 0.0
    %307 = vmatpush.xpose.msra.mxu0 0.0
    %308 = vmatpush.xpose.msra.mxu0 0.0
    %309 = vmatpush.xpose.msra.mxu0 0.0
    %310 = vmatpush.xpose.msra.mxu0 0.0
    %311 = vmatpush.xpose.msra.mxu0 0.0
    %312 = vmatpush.xpose.msra.mxu0 0.0
    %313 = vmatpush.xpose.msra.mxu0 0.0
    %314 = vmatpush.xpose.msra.mxu0 0.0
    %315 = vmatpush.xpose.msra.mxu0 0.0
    %316 = vmatpush.xpose.msra.mxu0 %v300
    %317 = vmatpush.xpose.msra.mxu0 %v298
    %318 = vmatmul.f32.gmra.mxu0 %v294
    %v319 = vpop.f32.mrf.mxu0
    %v320 = vadd.f32 0.0, %v319
    %321 = vmatmul.f32.gmra.mxu0 %v296
    %v322 = vpop.f32.mrf.mxu0
    %v323 = vadd.f32 0.0, %v322
    %324 = vdwg.mxu0
    %325 = vrot.lane.b32.xlu0 %v181, 64
    %v326 = vpop.permute.xlu0 %325
    %327 = vrot.lane.b32.xlu0 %v184, 64
    %v328 = vpop.permute.xlu0 %327
    %329 = vrot.lane.b32.xlu0 %v210, 64
    %v330 = vpop.permute.xlu0 %329
    %331 = vrot.lane.b32.xlu0 %v213, 64
    %v332 = vpop.permute.xlu0 %331
    %v333 = vsel %vm250, %v326, 0
    %v335 = vsel %vm250, %v328, 0
    %v337 = vsel %vm250, %v330, 0
    %v339 = vsel %vm250, %v332, 0
    %341 = vmatpush.xpose.msra.mxu0 0.0
    %342 = vmatpush.xpose.msra.mxu0 0.0
    %343 = vmatpush.xpose.msra.mxu0 0.0
    %344 = vmatpush.xpose.msra.mxu0 0.0
    %345 = vmatpush.xpose.msra.mxu0 0.0
    %346 = vmatpush.xpose.msra.mxu0 0.0
    %347 = vmatpush.xpose.msra.mxu0 0.0
    %348 = vmatpush.xpose.msra.mxu0 0.0
    %349 = vmatpush.xpose.msra.mxu0 0.0
    %350 = vmatpush.xpose.msra.mxu0 0.0
    %351 = vmatpush.xpose.msra.mxu0 0.0
    %352 = vmatpush.xpose.msra.mxu0 0.0
    %353 = vmatpush.xpose.msra.mxu0 0.0
    %354 = vmatpush.xpose.msra.mxu0 0.0
    %355 = vmatpush.xpose.msra.mxu0 %v339
    %356 = vmatpush.xpose.msra.mxu0 %v337
    %357 = vmatmul.f32.gmra.mxu0 %v333
    %v358 = vpop.f32.mrf.mxu0
    %v359 = vadd.f32 0.0, %v358
    %360 = vmatmul.f32.gmra.mxu0 %v335
    %v361 = vpop.f32.mrf.mxu0
    %v362 = vadd.f32 0.0, %v361
    %363 = vdwg.mxu0
    %364 = vrot.lane.b32.xlu0 %v181, 32
    %v365 = vpop.permute.xlu0 %364
    %366 = vrot.lane.b32.xlu0 %v184, 32
    %v367 = vpop.permute.xlu0 %366
    %368 = vrot.lane.b32.xlu0 %v210, 32
    %v369 = vpop.permute.xlu0 %368
    %370 = vrot.lane.b32.xlu0 %v213, 32
    %v371 = vpop.permute.xlu0 %370
    %v372 = vsel %vm250, %v365, 0
    %v374 = vsel %vm250, %v367, 0
    %v376 = vsel %vm250, %v369, 0
    %v378 = vsel %vm250, %v371, 0
    %380 = vmatpush.xpose.msra.mxu0 0.0
    %381 = vmatpush.xpose.msra.mxu0 0.0
    %382 = vmatpush.xpose.msra.mxu0 0.0
    %383 = vmatpush.xpose.msra.mxu0 0.0
    %384 = vmatpush.xpose.msra.mxu0 0.0
    %385 = vmatpush.xpose.msra.mxu0 0.0
    %386 = vmatpush.xpose.msra.mxu0 0.0
    %387 = vmatpush.xpose.msra.mxu0 0.0
    %388 = vmatpush.xpose.msra.mxu0 0.0
    %389 = vmatpush.xpose.msra.mxu0 0.0
    %390 = vmatpush.xpose.msra.mxu0 0.0
    %391 = vmatpush.xpose.msra.mxu0 0.0
    %392 = vmatpush.xpose.msra.mxu0 0.0
    %393 = vmatpush.xpose.msra.mxu0 0.0
    %394 = vmatpush.xpose.msra.mxu0 %v378
    %395 = vmatpush.xpose.msra.mxu0 %v376
    %396 = vmatmul.f32.gmra.mxu0 %v372
    %v397 = vpop.f32.mrf.mxu0
    %v398 = vadd.f32 0.0, %v397
    %399 = vmatmul.f32.gmra.mxu0 %v374
    %v400 = vpop.f32.mrf.mxu0
    %v401 = vadd.f32 0.0, %v400
    %402 = vdwg.mxu0
    %v404 = vsel %vm250, %v187, 0
    %v407 = vsel %vm250, %v190, 0
    %v410 = vsel %vm250, %v216, 0
    %v413 = vsel %vm250, %v219, 0
    %415 = vmatpush.xpose.msra.mxu0 0.0
    %416 = vmatpush.xpose.msra.mxu0 0.0
    %417 = vmatpush.xpose.msra.mxu0 0.0
    %418 = vmatpush.xpose.msra.mxu0 0.0
    %419 = vmatpush.xpose.msra.mxu0 0.0
    %420 = vmatpush.xpose.msra.mxu0 0.0
    %421 = vmatpush.xpose.msra.mxu0 0.0
    %422 = vmatpush.xpose.msra.mxu0 0.0
    %423 = vmatpush.xpose.msra.mxu0 0.0
    %424 = vmatpush.xpose.msra.mxu0 0.0
    %425 = vmatpush.xpose.msra.mxu0 0.0
    %426 = vmatpush.xpose.msra.mxu0 0.0
    %427 = vmatpush.xpose.msra.mxu0 0.0
    %428 = vmatpush.xpose.msra.mxu0 0.0
    %429 = vmatpush.xpose.msra.mxu0 %v413
    %430 = vmatpush.xpose.msra.mxu0 %v410
    %431 = vmatmul.f32.gmra.mxu0 %v404
    %v432 = vpop.f32.mrf.mxu0
    %v433 = vadd.f32 0.0, %v432
    %434 = vmatmul.f32.gmra.mxu0 %v407
    %v435 = vpop.f32.mrf.mxu0
    %v436 = vadd.f32 0.0, %v435
    %437 = vdwg.mxu0
    %438 = vrot.lane.b32.xlu0 %v187, 96
    %v439 = vpop.permute.xlu0 %438
    %440 = vrot.lane.b32.xlu0 %v190, 96
    %v441 = vpop.permute.xlu0 %440
    %442 = vrot.lane.b32.xlu0 %v216, 96
    %v443 = vpop.permute.xlu0 %442
    %444 = vrot.lane.b32.xlu0 %v219, 96
    %v445 = vpop.permute.xlu0 %444
    %v446 = vsel %vm250, %v439, 0
    %v448 = vsel %vm250, %v441, 0
    %v450 = vsel %vm250, %v443, 0
    %v452 = vsel %vm250, %v445, 0
    %454 = vmatpush.xpose.msra.mxu0 0.0
    %455 = vmatpush.xpose.msra.mxu0 0.0
    %456 = vmatpush.xpose.msra.mxu0 0.0
    %457 = vmatpush.xpose.msra.mxu0 0.0
    %458 = vmatpush.xpose.msra.mxu0 0.0
    %459 = vmatpush.xpose.msra.mxu0 0.0
    %460 = vmatpush.xpose.msra.mxu0 0.0
    %461 = vmatpush.xpose.msra.mxu0 0.0
    %462 = vmatpush.xpose.msra.mxu0 0.0
    %463 = vmatpush.xpose.msra.mxu0 0.0
    %464 = vmatpush.xpose.msra.mxu0 0.0
    %465 = vmatpush.xpose.msra.mxu0 0.0
    %466 = vmatpush.xpose.msra.mxu0 0.0
    %467 = vmatpush.xpose.msra.mxu0 0.0
    %468 = vmatpush.xpose.msra.mxu0 %v452
    %469 = vmatpush.xpose.msra.mxu0 %v450
    %470 = vmatmul.f32.gmra.mxu0 %v446
    %v471 = vpop.f32.mrf.mxu0
    %v472 = vadd.f32 0.0, %v471
    %473 = vmatmul.f32.gmra.mxu0 %v448
    %v474 = vpop.f32.mrf.mxu0
    %v475 = vadd.f32 0.0, %v474
    %476 = vdwg.mxu0
    %477 = vrot.lane.b32.xlu0 %v187, 64
    %v478 = vpop.permute.xlu0 %477
    %479 = vrot.lane.b32.xlu0 %v190, 64
    %v480 = vpop.permute.xlu0 %479
    %481 = vrot.lane.b32.xlu0 %v216, 64
    %v482 = vpop.permute.xlu0 %481
    %483 = vrot.lane.b32.xlu0 %v219, 64
    %v484 = vpop.permute.xlu0 %483
    %v485 = vsel %vm250, %v478, 0
    %v487 = vsel %vm250, %v480, 0
    %v489 = vsel %vm250, %v482, 0
    %v491 = vsel %vm250, %v484, 0
    %493 = vmatpush.xpose.msra.mxu0 0.0
    %494 = vmatpush.xpose.msra.mxu0 0.0
    %495 = vmatpush.xpose.msra.mxu0 0.0
    %496 = vmatpush.xpose.msra.mxu0 0.0
    %497 = vmatpush.xpose.msra.mxu0 0.0
    %498 = vmatpush.xpose.msra.mxu0 0.0
    %499 = vmatpush.xpose.msra.mxu0 0.0
    %500 = vmatpush.xpose.msra.mxu0 0.0
    %501 = vmatpush.xpose.msra.mxu0 0.0
    %502 = vmatpush.xpose.msra.mxu0 0.0
    %503 = vmatpush.xpose.msra.mxu0 0.0
    %504 = vmatpush.xpose.msra.mxu0 0.0
    %505 = vmatpush.xpose.msra.mxu0 0.0
    %506 = vmatpush.xpose.msra.mxu0 0.0
    %507 = vmatpush.xpose.msra.mxu0 %v491
    %508 = vmatpush.xpose.msra.mxu0 %v489
    %509 = vmatmul.f32.gmra.mxu0 %v485
    %v510 = vpop.f32.mrf.mxu0
    %v511 = vadd.f32 0.0, %v510
    %512 = vmatmul.f32.gmra.mxu0 %v487
    %v513 = vpop.f32.mrf.mxu0
    %v514 = vadd.f32 0.0, %v513
    %515 = vdwg.mxu0
    %516 = vrot.lane.b32.xlu0 %v187, 32
    %v517 = vpop.permute.xlu0 %516
    %518 = vrot.lane.b32.xlu0 %v190, 32
    %v519 = vpop.permute.xlu0 %518
    %520 = vrot.lane.b32.xlu0 %v216, 32
    %v521 = vpop.permute.xlu0 %520
    %522 = vrot.lane.b32.xlu0 %v219, 32
    %v523 = vpop.permute.xlu0 %522
    %v524 = vsel %vm250, %v517, 0
    %v526 = vsel %vm250, %v519, 0
    %v528 = vsel %vm250, %v521, 0
    %v530 = vsel %vm250, %v523, 0
    %532 = vmatpush.xpose.msra.mxu0 0.0
    %533 = vmatpush.xpose.msra.mxu0 0.0
    %534 = vmatpush.xpose.msra.mxu0 0.0
    %535 = vmatpush.xpose.msra.mxu0 0.0
    %536 = vmatpush.xpose.msra.mxu0 0.0
    %537 = vmatpush.xpose.msra.mxu0 0.0
    %538 = vmatpush.xpose.msra.mxu0 0.0
    %539 = vmatpush.xpose.msra.mxu0 0.0
    %540 = vmatpush.xpose.msra.mxu0 0.0
    %541 = vmatpush.xpose.msra.mxu0 0.0
    %542 = vmatpush.xpose.msra.mxu0 0.0
    %543 = vmatpush.xpose.msra.mxu0 0.0
    %544 = vmatpush.xpose.msra.mxu0 0.0
    %545 = vmatpush.xpose.msra.mxu0 0.0
    %546 = vmatpush.xpose.msra.mxu0 %v530
    %547 = vmatpush.xpose.msra.mxu0 %v528
    %548 = vmatmul.f32.gmra.mxu0 %v524
    %v549 = vpop.f32.mrf.mxu0
    %v550 = vadd.f32 0.0, %v549
    %551 = vmatmul.f32.gmra.mxu0 %v526
    %v552 = vpop.f32.mrf.mxu0
    %v553 = vadd.f32 0.0, %v552
    %554 = vdwg.mxu0
    %vm555 = vcmask 130048
    %v556 = vsel %vm555, %v281, -inf
    %557 = vmax.xlane.f32.xlu0 %v556
    %v558 = vpop.xlane.xlu0 %557
    %v559 = vsel %vm555, %v284, -inf
    %560 = vmax.xlane.f32.xlu0 %v559
    %v561 = vpop.xlane.xlu0 %560
    %v562 = vsel %vm555, %v320, -inf
    %563 = vmax.xlane.f32.xlu0 %v562
    %v564 = vpop.xlane.xlu0 %563
    %v565 = vsel %vm555, %v323, -inf
    %566 = vmax.xlane.f32.xlu0 %v565
    %v567 = vpop.xlane.xlu0 %566
    %v568 = vsel %vm555, %v359, -inf
    %569 = vmax.xlane.f32.xlu0 %v568
    %v570 = vpop.xlane.xlu0 %569
    %v571 = vsel %vm555, %v362, -inf
    %572 = vmax.xlane.f32.xlu0 %v571
    %v573 = vpop.xlane.xlu0 %572
    %v574 = vsel %vm555, %v398, -inf
    %575 = vmax.xlane.f32.xlu0 %v574
    %v576 = vpop.xlane.xlu0 %575
    %v577 = vsel %vm555, %v401, -inf
    %578 = vmax.xlane.f32.xlu0 %v577
    %v579 = vpop.xlane.xlu0 %578
    %v580 = vsel %vm555, %v433, -inf
    %581 = vmax.xlane.f32.xlu0 %v580
    %v582 = vpop.xlane.xlu0 %581
    %v583 = vsel %vm555, %v436, -inf
    %584 = vmax.xlane.f32.xlu0 %v583
    %v585 = vpop.xlane.xlu0 %584
    %v586 = vsel %vm555, %v472, -inf
    %587 = vmax.xlane.f32.xlu0 %v586
    %v588 = vpop.xlane.xlu0 %587
    %v589 = vsel %vm555, %v475, -inf
    %590 = vmax.xlane.f32.xlu0 %v589
    %v591 = vpop.xlane.xlu0 %590
    %v592 = vsel %vm555, %v511, -inf
    %593 = vmax.xlane.f32.xlu0 %v592
    %v594 = vpop.xlane.xlu0 %593
    %v595 = vsel %vm555, %v514, -inf
    %596 = vmax.xlane.f32.xlu0 %v595
    %v597 = vpop.xlane.xlu0 %596
    %v598 = vsel %vm555, %v550, -inf
    %599 = vmax.xlane.f32.xlu0 %v598
    %v600 = vpop.xlane.xlu0 %599
    %v601 = vsel %vm555, %v553, -inf
    %602 = vmax.xlane.f32.xlu0 %v601
    %v603 = vpop.xlane.xlu0 %602
    %v604 = vsub.f32 %v281, %v558
    %v605 = vsub.f32 %v284, %v561
    %v606 = vsub.f32 %v320, %v564
    %v607 = vsub.f32 %v323, %v567
    %v608 = vsub.f32 %v359, %v570
    %v609 = vsub.f32 %v362, %v573
    %v610 = vsub.f32 %v398, %v576
    %v611 = vsub.f32 %v401, %v579
    %v612 = vsub.f32 %v433, %v582
    %v613 = vsub.f32 %v436, %v585
    %v614 = vsub.f32 %v472, %v588
    %v615 = vsub.f32 %v475, %v591
    %v616 = vsub.f32 %v511, %v594
    %v617 = vsub.f32 %v514, %v597
    %v618 = vsub.f32 %v550, %v600
    %v619 = vsub.f32 %v553, %v603
    %v620 = vmul.f32 %v604, 1.442695
    %v621 = vpow.pop %v620
    %v622 = vmul.f32 %v605, 1.442695
    %v623 = vpow.pop %v622
    %v624 = vmul.f32 %v606, 1.442695
    %v625 = vpow.pop %v624
    %v626 = vmul.f32 %v607, 1.442695
    %v627 = vpow.pop %v626
    %v628 = vmul.f32 %v608, 1.442695
    %v629 = vpow.pop %v628
    %v630 = vmul.f32 %v609, 1.442695
    %v631 = vpow.pop %v630
    %v632 = vmul.f32 %v610, 1.442695
    %v633 = vpow.pop %v632
    %v634 = vmul.f32 %v611, 1.442695
    %v635 = vpow.pop %v634
    %v636 = vmul.f32 %v612, 1.442695
    %v637 = vpow.pop %v636
    %v638 = vmul.f32 %v613, 1.442695
    %v639 = vpow.pop %v638
    %v640 = vmul.f32 %v614, 1.442695
    %v641 = vpow.pop %v640
    %v642 = vmul.f32 %v615, 1.442695
    %v643 = vpow.pop %v642
    %v644 = vmul.f32 %v616, 1.442695
    %v645 = vpow.pop %v644
    %v646 = vmul.f32 %v617, 1.442695
    %v647 = vpow.pop %v646
    %v648 = vmul.f32 %v618, 1.442695
    %v649 = vpow.pop %v648
    %v650 = vmul.f32 %v619, 1.442695
    %v651 = vpow.pop %v650
    %v652 = vsel %vm555, %v621, 0.0
    %653 = vadd.xlane.f32.xlu0 %v652
    %v654 = vpop.xlane.xlu0 %653
    %v655 = vsel %vm555, %v623, 0.0
    %656 = vadd.xlane.f32.xlu0 %v655
    %v657 = vpop.xlane.xlu0 %656
    %v658 = vsel %vm555, %v625, 0.0
    %659 = vadd.xlane.f32.xlu0 %v658
    %v660 = vpop.xlane.xlu0 %659
    %v661 = vsel %vm555, %v627, 0.0
    %662 = vadd.xlane.f32.xlu0 %v661
    %v663 = vpop.xlane.xlu0 %662
    %v664 = vsel %vm555, %v629, 0.0
    %665 = vadd.xlane.f32.xlu0 %v664
    %v666 = vpop.xlane.xlu0 %665
    %v667 = vsel %vm555, %v631, 0.0
    %668 = vadd.xlane.f32.xlu0 %v667
    %v669 = vpop.xlane.xlu0 %668
    %v670 = vsel %vm555, %v633, 0.0
    %671 = vadd.xlane.f32.xlu0 %v670
    %v672 = vpop.xlane.xlu0 %671
    %v673 = vsel %vm555, %v635, 0.0
    %674 = vadd.xlane.f32.xlu0 %v673
    %v675 = vpop.xlane.xlu0 %674
    %v676 = vsel %vm555, %v637, 0.0
    %677 = vadd.xlane.f32.xlu0 %v676
    %v678 = vpop.xlane.xlu0 %677
    %v679 = vsel %vm555, %v639, 0.0
    %680 = vadd.xlane.f32.xlu0 %v679
    %v681 = vpop.xlane.xlu0 %680
    %v682 = vsel %vm555, %v641, 0.0
    %683 = vadd.xlane.f32.xlu0 %v682
    %v684 = vpop.xlane.xlu0 %683
    %v685 = vsel %vm555, %v643, 0.0
    %686 = vadd.xlane.f32.xlu0 %v685
    %v687 = vpop.xlane.xlu0 %686
    %v688 = vsel %vm555, %v645, 0.0
    %689 = vadd.xlane.f32.xlu0 %v688
    %v690 = vpop.xlane.xlu0 %689
    %v691 = vsel %vm555, %v647, 0.0
    %692 = vadd.xlane.f32.xlu0 %v691
    %v693 = vpop.xlane.xlu0 %692
    %v694 = vsel %vm555, %v649, 0.0
    %695 = vadd.xlane.f32.xlu0 %v694
    %v696 = vpop.xlane.xlu0 %695
    %v697 = vsel %vm555, %v651, 0.0
    %698 = vadd.xlane.f32.xlu0 %v697
    %v699 = vpop.xlane.xlu0 %698
    %v700 = vrcp.pop %v654
    %v701 = vmul.f32 %v654, %v700
    %v702 = vsub.f32 1.0, %v701
    %v703 = vmul.f32 %v700, %v702
    %v704 = vadd.f32 %v700, %v703
    %vm705 = vweird.f32 %v654
    %vm706 = vweird.f32 %v700
    %vm707 = vmor %vm705, %vm706
    %v708 = vsel %vm707, %v700, %v704
    %v709 = vand.u32 2147483647, %v654
    %vm710 = vcmp.eq.f32.partialorder %v709, 8.507059e+37
    %v711 = vand.u32 %v654, 2147483648
    %v712 = vor.u32 1.1754944e-38, %v711
    %v713 = vsel %vm710, %v712, %v708
    %v714 = vrcp.pop %v657
    %v715 = vmul.f32 %v657, %v714
    %v716 = vsub.f32 1.0, %v715
    %v717 = vmul.f32 %v714, %v716
    %v718 = vadd.f32 %v714, %v717
    %vm719 = vweird.f32 %v657
    %vm720 = vweird.f32 %v714
    %vm721 = vmor %vm719, %vm720
    %v722 = vsel %vm721, %v714, %v718
    %v723 = vand.u32 2147483647, %v657
    %vm724 = vcmp.eq.f32.partialorder %v723, 8.507059e+37
    %v725 = vand.u32 %v657, 2147483648
    %v726 = vor.u32 1.1754944e-38, %v725
    %v727 = vsel %vm724, %v726, %v722
    %v728 = vrcp.pop %v660
    %v729 = vmul.f32 %v660, %v728
    %v730 = vsub.f32 1.0, %v729
    %v731 = vmul.f32 %v728, %v730
    %v732 = vadd.f32 %v728, %v731
    %vm733 = vweird.f32 %v660
    %vm734 = vweird.f32 %v728
    %vm735 = vmor %vm733, %vm734
    %v736 = vsel %vm735, %v728, %v732
    %v737 = vand.u32 2147483647, %v660
    %vm738 = vcmp.eq.f32.partialorder %v737, 8.507059e+37
    %v739 = vand.u32 %v660, 2147483648
    %v740 = vor.u32 1.1754944e-38, %v739
    %v741 = vsel %vm738, %v740, %v736
    %v742 = vrcp.pop %v663
    %v743 = vmul.f32 %v663, %v742
    %v744 = vsub.f32 1.0, %v743
    %v745 = vmul.f32 %v742, %v744
    %v746 = vadd.f32 %v742, %v745
    %vm747 = vweird.f32 %v663
    %vm748 = vweird.f32 %v742
    %vm749 = vmor %vm747, %vm748
    %v750 = vsel %vm749, %v742, %v746
    %v751 = vand.u32 2147483647, %v663
    %vm752 = vcmp.eq.f32.partialorder %v751, 8.507059e+37
    %v753 = vand.u32 %v663, 2147483648
    %v754 = vor.u32 1.1754944e-38, %v753
    %v755 = vsel %vm752, %v754, %v750
    %v756 = vrcp.pop %v666
    %v757 = vmul.f32 %v666, %v756
    %v758 = vsub.f32 1.0, %v757
    %v759 = vmul.f32 %v756, %v758
    %v760 = vadd.f32 %v756, %v759
    %vm761 = vweird.f32 %v666
    %vm762 = vweird.f32 %v756
    %vm763 = vmor %vm761, %vm762
    %v764 = vsel %vm763, %v756, %v760
    %v765 = vand.u32 2147483647, %v666
    %vm766 = vcmp.eq.f32.partialorder %v765, 8.507059e+37
    %v767 = vand.u32 %v666, 2147483648
    %v768 = vor.u32 1.1754944e-38, %v767
    %v769 = vsel %vm766, %v768, %v764
    %v770 = vrcp.pop %v669
    %v771 = vmul.f32 %v669, %v770
    %v772 = vsub.f32 1.0, %v771
    %v773 = vmul.f32 %v770, %v772
    %v774 = vadd.f32 %v770, %v773
    %vm775 = vweird.f32 %v669
    %vm776 = vweird.f32 %v770
    %vm777 = vmor %vm775, %vm776
    %v778 = vsel %vm777, %v770, %v774
    %v779 = vand.u32 2147483647, %v669
    %vm780 = vcmp.eq.f32.partialorder %v779, 8.507059e+37
    %v781 = vand.u32 %v669, 2147483648
    %v782 = vor.u32 1.1754944e-38, %v781
    %v783 = vsel %vm780, %v782, %v778
    %v784 = vrcp.pop %v672
    %v785 = vmul.f32 %v672, %v784
    %v786 = vsub.f32 1.0, %v785
    %v787 = vmul.f32 %v784, %v786
    %v788 = vadd.f32 %v784, %v787
    %vm789 = vweird.f32 %v672
    %vm790 = vweird.f32 %v784
    %vm791 = vmor %vm789, %vm790
    %v792 = vsel %vm791, %v784, %v788
    %v793 = vand.u32 2147483647, %v672
    %vm794 = vcmp.eq.f32.partialorder %v793, 8.507059e+37
    %v795 = vand.u32 %v672, 2147483648
    %v796 = vor.u32 1.1754944e-38, %v795
    %v797 = vsel %vm794, %v796, %v792
    %v798 = vrcp.pop %v675
    %v799 = vmul.f32 %v675, %v798
    %v800 = vsub.f32 1.0, %v799
    %v801 = vmul.f32 %v798, %v800
    %v802 = vadd.f32 %v798, %v801
    %vm803 = vweird.f32 %v675
    %vm804 = vweird.f32 %v798
    %vm805 = vmor %vm803, %vm804
    %v806 = vsel %vm805, %v798, %v802
    %v807 = vand.u32 2147483647, %v675
    %vm808 = vcmp.eq.f32.partialorder %v807, 8.507059e+37
    %v809 = vand.u32 %v675, 2147483648
    %v810 = vor.u32 1.1754944e-38, %v809
    %v811 = vsel %vm808, %v810, %v806
    %v812 = vrcp.pop %v678
    %v813 = vmul.f32 %v678, %v812
    %v814 = vsub.f32 1.0, %v813
    %v815 = vmul.f32 %v812, %v814
    %v816 = vadd.f32 %v812, %v815
    %vm817 = vweird.f32 %v678
    %vm818 = vweird.f32 %v812
    %vm819 = vmor %vm817, %vm818
    %v820 = vsel %vm819, %v812, %v816
    %v821 = vand.u32 2147483647, %v678
    %vm822 = vcmp.eq.f32.partialorder %v821, 8.507059e+37
    %v823 = vand.u32 %v678, 2147483648
    %v824 = vor.u32 1.1754944e-38, %v823
    %v825 = vsel %vm822, %v824, %v820
    %v826 = vrcp.pop %v681
    %v827 = vmul.f32 %v681, %v826
    %v828 = vsub.f32 1.0, %v827
    %v829 = vmul.f32 %v826, %v828
    %v830 = vadd.f32 %v826, %v829
    %vm831 = vweird.f32 %v681
    %vm832 = vweird.f32 %v826
    %vm833 = vmor %vm831, %vm832
    %v834 = vsel %vm833, %v826, %v830
    %v835 = vand.u32 2147483647, %v681
    %vm836 = vcmp.eq.f32.partialorder %v835, 8.507059e+37
    %v837 = vand.u32 %v681, 2147483648
    %v838 = vor.u32 1.1754944e-38, %v837
    %v839 = vsel %vm836, %v838, %v834
    %v840 = vrcp.pop %v684
    %v841 = vmul.f32 %v684, %v840
    %v842 = vsub.f32 1.0, %v841
    %v843 = vmul.f32 %v840, %v842
    %v844 = vadd.f32 %v840, %v843
    %vm845 = vweird.f32 %v684
    %vm846 = vweird.f32 %v840
    %vm847 = vmor %vm845, %vm846
    %v848 = vsel %vm847, %v840, %v844
    %v849 = vand.u32 2147483647, %v684
    %vm850 = vcmp.eq.f32.partialorder %v849, 8.507059e+37
    %v851 = vand.u32 %v684, 2147483648
    %v852 = vor.u32 1.1754944e-38, %v851
    %v853 = vsel %vm850, %v852, %v848
    %v854 = vrcp.pop %v687
    %v855 = vmul.f32 %v687, %v854
    %v856 = vsub.f32 1.0, %v855
    %v857 = vmul.f32 %v854, %v856
    %v858 = vadd.f32 %v854, %v857
    %vm859 = vweird.f32 %v687
    %vm860 = vweird.f32 %v854
    %vm861 = vmor %vm859, %vm860
    %v862 = vsel %vm861, %v854, %v858
    %v863 = vand.u32 2147483647, %v687
    %vm864 = vcmp.eq.f32.partialorder %v863, 8.507059e+37
    %v865 = vand.u32 %v687, 2147483648
    %v866 = vor.u32 1.1754944e-38, %v865
    %v867 = vsel %vm864, %v866, %v862
    %v868 = vrcp.pop %v690
    %v869 = vmul.f32 %v690, %v868
    %v870 = vsub.f32 1.0, %v869
    %v871 = vmul.f32 %v868, %v870
    %v872 = vadd.f32 %v868, %v871
    %vm873 = vweird.f32 %v690
    %vm874 = vweird.f32 %v868
    %vm875 = vmor %vm873, %vm874
    %v876 = vsel %vm875, %v868, %v872
    %v877 = vand.u32 2147483647, %v690
    %vm878 = vcmp.eq.f32.partialorder %v877, 8.507059e+37
    %v879 = vand.u32 %v690, 2147483648
    %v880 = vor.u32 1.1754944e-38, %v879
    %v881 = vsel %vm878, %v880, %v876
    %v882 = vrcp.pop %v693
    %v883 = vmul.f32 %v693, %v882
    %v884 = vsub.f32 1.0, %v883
    %v885 = vmul.f32 %v882, %v884
    %v886 = vadd.f32 %v882, %v885
    %vm887 = vweird.f32 %v693
    %vm888 = vweird.f32 %v882
    %vm889 = vmor %vm887, %vm888
    %v890 = vsel %vm889, %v882, %v886
    %v891 = vand.u32 2147483647, %v693
    %vm892 = vcmp.eq.f32.partialorder %v891, 8.507059e+37
    %v893 = vand.u32 %v693, 2147483648
    %v894 = vor.u32 1.1754944e-38, %v893
    %v895 = vsel %vm892, %v894, %v890
    %v896 = vrcp.pop %v696
    %v897 = vmul.f32 %v696, %v896
    %v898 = vsub.f32 1.0, %v897
    %v899 = vmul.f32 %v896, %v898
    %v900 = vadd.f32 %v896, %v899
    %vm901 = vweird.f32 %v696
    %vm902 = vweird.f32 %v896
    %vm903 = vmor %vm901, %vm902
    %v904 = vsel %vm903, %v896, %v900
    %v905 = vand.u32 2147483647, %v696
    %vm906 = vcmp.eq.f32.partialorder %v905, 8.507059e+37
    %v907 = vand.u32 %v696, 2147483648
    %v908 = vor.u32 1.1754944e-38, %v907
    %v909 = vsel %vm906, %v908, %v904
    %v910 = vrcp.pop %v699
    %v911 = vmul.f32 %v699, %v910
    %v912 = vsub.f32 1.0, %v911
    %v913 = vmul.f32 %v910, %v912
    %v914 = vadd.f32 %v910, %v913
    %vm915 = vweird.f32 %v699
    %vm916 = vweird.f32 %v910
    %vm917 = vmor %vm915, %vm916
    %v918 = vsel %vm917, %v910, %v914
    %v919 = vand.u32 2147483647, %v699
    %vm920 = vcmp.eq.f32.partialorder %v919, 8.507059e+37
    %v921 = vand.u32 %v699, 2147483648
    %v922 = vor.u32 1.1754944e-38, %v921
    %v923 = vsel %vm920, %v922, %v918
    %v924 = vmul.f32 %v621, %v713
    %v925 = vmul.f32 %v623, %v727
    %v926 = vmul.f32 %v625, %v741
    %v927 = vmul.f32 %v627, %v755
    %v928 = vmul.f32 %v629, %v769
    %v929 = vmul.f32 %v631, %v783
    %v930 = vmul.f32 %v633, %v797
    %v931 = vmul.f32 %v635, %v811
    %v932 = vmul.f32 %v637, %v825
    %v933 = vmul.f32 %v639, %v839
    %v934 = vmul.f32 %v641, %v853
    %v935 = vmul.f32 %v643, %v867
    %v936 = vmul.f32 %v645, %v881
    %v937 = vmul.f32 %v647, %v895
    %v938 = vmul.f32 %v649, %v909
    %v939 = vmul.f32 %v651, %v923
    %v941 = vsel %vm555, %v924, 0
    %v944 = vsel %vm555, %v925, 0
    %946 = vmatpush.msra.mxu0 0.0
    %947 = vmatpush.msra.mxu0 0.0
    %948 = vmatpush.msra.mxu0 0.0
    %949 = vmatpush.msra.mxu0 0.0
    %950 = vmatpush.msra.mxu0 0.0
    %951 = vmatpush.msra.mxu0 0.0
    %952 = vmatpush.msra.mxu0 0.0
    %953 = vmatpush.msra.mxu0 0.0
    %954 = vmatpush.msra.mxu0 0.0
    %955 = vmatpush.msra.mxu0 0.0
    %956 = vmatpush.msra.mxu0 0.0
    %957 = vmatpush.msra.mxu0 0.0
    %958 = vmatpush.msra.mxu0 0.0
    %959 = vmatpush.msra.mxu0 0.0
    %960 = vmatpush.msra.mxu0 %v242
    %961 = vmatpush.msra.mxu0 %v239
    %962 = vmatmul.f32.gmra.mxu0 %v941
    %v963 = vpop.f32.mrf.mxu0
    %v964 = vadd.f32 0.0, %v963
    %965 = vmatmul.f32.gmra.mxu0 %v944
    %v966 = vpop.f32.mrf.mxu0
    %v967 = vadd.f32 0.0, %v966
    %968 = vdwg.mxu0
    %969 = vst.msk [vmem:[#allocation2] sm:$0xff] %vm250, %v964
    %970 = vst.msk [vmem:[#allocation2 + $0x8] sm:$0xff] %vm250, %v967
    %973 = vrot.lane.b32.xlu0 %v239, 96
    %v974 = vpop.permute.xlu0 %973
    %975 = vrot.lane.b32.xlu0 %v242, 96
    %v976 = vpop.permute.xlu0 %975
    %v980 = vsel %vm555, %v926, 0
    %v983 = vsel %vm555, %v927, 0
    %985 = vmatpush.msra.mxu0 0.0
    %986 = vmatpush.msra.mxu0 0.0
    %987 = vmatpush.msra.mxu0 0.0
    %988 = vmatpush.msra.mxu0 0.0
    %989 = vmatpush.msra.mxu0 0.0
    %990 = vmatpush.msra.mxu0 0.0
    %991 = vmatpush.msra.mxu0 0.0
    %992 = vmatpush.msra.mxu0 0.0
    %993 = vmatpush.msra.mxu0 0.0
    %994 = vmatpush.msra.mxu0 0.0
    %995 = vmatpush.msra.mxu0 0.0
    %996 = vmatpush.msra.mxu0 0.0
    %997 = vmatpush.msra.mxu0 0.0
    %998 = vmatpush.msra.mxu0 0.0
    %999 = vmatpush.msra.mxu0 %v976
    %1000 = vmatpush.msra.mxu0 %v974
    %1001 = vmatmul.f32.gmra.mxu0 %v980
    %v1002 = vpop.f32.mrf.mxu0
    %v1003 = vadd.f32 0.0, %v1002
    %1004 = vmatmul.f32.gmra.mxu0 %v983
    %v1005 = vpop.f32.mrf.mxu0
    %v1006 = vadd.f32 0.0, %v1005
    %1007 = vdwg.mxu0
    %1010 = vrot.lane.b32.xlu0 %v1003, 32
    %v1011 = vpop.permute.xlu0 %1010
    %1012 = vrot.lane.b32.xlu0 %v1006, 32
    %v1013 = vpop.permute.xlu0 %1012
    %vm1016 = vcmask 523520
    %1017 = vst.msk [vmem:[#allocation2] sm:$0xff] %vm1016, %v1011
    %1018 = vst.msk [vmem:[#allocation2 + $0x8] sm:$0xff] %vm1016, %v1013
    %1019 = vrot.lane.b32.xlu0 %v239, 64
    %v1020 = vpop.permute.xlu0 %1019
    %1021 = vrot.lane.b32.xlu0 %v242, 64
    %v1022 = vpop.permute.xlu0 %1021
    %v1026 = vsel %vm555, %v928, 0
    %v1029 = vsel %vm555, %v929, 0
    %1031 = vmatpush.msra.mxu0 0.0
    %1032 = vmatpush.msra.mxu0 0.0
    %1033 = vmatpush.msra.mxu0 0.0
    %1034 = vmatpush.msra.mxu0 0.0
    %1035 = vmatpush.msra.mxu0 0.0
    %1036 = vmatpush.msra.mxu0 0.0
    %1037 = vmatpush.msra.mxu0 0.0
    %1038 = vmatpush.msra.mxu0 0.0
    %1039 = vmatpush.msra.mxu0 0.0
    %1040 = vmatpush.msra.mxu0 0.0
    %1041 = vmatpush.msra.mxu0 0.0
    %1042 = vmatpush.msra.mxu0 0.0
    %1043 = vmatpush.msra.mxu0 0.0
    %1044 = vmatpush.msra.mxu0 0.0
    %1045 = vmatpush.msra.mxu0 %v1022
    %1046 = vmatpush.msra.mxu0 %v1020
    %1047 = vmatmul.f32.gmra.mxu0 %v1026
    %v1048 = vpop.f32.mrf.mxu0
    %v1049 = vadd.f32 0.0, %v1048
    %1050 = vmatmul.f32.gmra.mxu0 %v1029
    %v1051 = vpop.f32.mrf.mxu0
    %v1052 = vadd.f32 0.0, %v1051
    %1053 = vdwg.mxu0
    %1056 = vrot.lane.b32.xlu0 %v1049, 64
    %v1057 = vpop.permute.xlu0 %1056
    %1058 = vrot.lane.b32.xlu0 %v1052, 64
    %v1059 = vpop.permute.xlu0 %1058
    %vm1062 = vcmask 785920
    %1063 = vst.msk [vmem:[#allocation2] sm:$0xff] %vm1062, %v1057
    %1064 = vst.msk [vmem:[#allocation2 + $0x8] sm:$0xff] %vm1062, %v1059
    %1065 = vrot.lane.b32.xlu0 %v239, 32
    %v1066 = vpop.permute.xlu0 %1065
    %1067 = vrot.lane.b32.xlu0 %v242, 32
    %v1068 = vpop.permute.xlu0 %1067
    %v1072 = vsel %vm555, %v930, 0
    %v1075 = vsel %vm555, %v931, 0
    %1077 = vmatpush.msra.mxu0 0.0
    %1078 = vmatpush.msra.mxu0 0.0
    %1079 = vmatpush.msra.mxu0 0.0
    %1080 = vmatpush.msra.mxu0 0.0
    %1081 = vmatpush.msra.mxu0 0.0
    %1082 = vmatpush.msra.mxu0 0.0
    %1083 = vmatpush.msra.mxu0 0.0
    %1084 = vmatpush.msra.mxu0 0.0
    %1085 = vmatpush.msra.mxu0 0.0
    %1086 = vmatpush.msra.mxu0 0.0
    %1087 = vmatpush.msra.mxu0 0.0
    %1088 = vmatpush.msra.mxu0 0.0
    %1089 = vmatpush.msra.mxu0 0.0
    %1090 = vmatpush.msra.mxu0 0.0
    %1091 = vmatpush.msra.mxu0 %v1068
    %1092 = vmatpush.msra.mxu0 %v1066
    %1093 = vmatmul.f32.gmra.mxu0 %v1072
    %v1094 = vpop.f32.mrf.mxu0
    %v1095 = vadd.f32 0.0, %v1094
    %1096 = vmatmul.f32.gmra.mxu0 %v1075
    %v1097 = vpop.f32.mrf.mxu0
    %v1098 = vadd.f32 0.0, %v1097
    %1099 = vdwg.mxu0
    %1102 = vrot.lane.b32.xlu0 %v1095, 96
    %v1103 = vpop.permute.xlu0 %1102
    %1104 = vrot.lane.b32.xlu0 %v1098, 96
    %v1105 = vpop.permute.xlu0 %1104
    %vm1108 = vcmask 1048320
    %1109 = vst.msk [vmem:[#allocation2] sm:$0xff] %vm1108, %v1103
    %1110 = vst.msk [vmem:[#allocation2 + $0x8] sm:$0xff] %vm1108, %v1105
    %v1112 = vsel %vm555, %v932, 0
    %v1115 = vsel %vm555, %v933, 0
    %1117 = vmatpush.msra.mxu0 0.0
    %1118 = vmatpush.msra.mxu0 0.0
    %1119 = vmatpush.msra.mxu0 0.0
    %1120 = vmatpush.msra.mxu0 0.0
    %1121 = vmatpush.msra.mxu0 0.0
    %1122 = vmatpush.msra.mxu0 0.0
    %1123 = vmatpush.msra.mxu0 0.0
    %1124 = vmatpush.msra.mxu0 0.0
    %1125 = vmatpush.msra.mxu0 0.0
    %1126 = vmatpush.msra.mxu0 0.0
    %1127 = vmatpush.msra.mxu0 0.0
    %1128 = vmatpush.msra.mxu0 0.0
    %1129 = vmatpush.msra.mxu0 0.0
    %1130 = vmatpush.msra.mxu0 0.0
    %1131 = vmatpush.msra.mxu0 %v248
    %1132 = vmatpush.msra.mxu0 %v245
    %1133 = vmatmul.f32.gmra.mxu0 %v1112
    %v1134 = vpop.f32.mrf.mxu0
    %v1135 = vadd.f32 0.0, %v1134
    %1136 = vmatmul.f32.gmra.mxu0 %v1115
    %v1137 = vpop.f32.mrf.mxu0
    %v1138 = vadd.f32 0.0, %v1137
    %1139 = vdwg.mxu0
    %1140 = vst.msk [vmem:[#allocation2 + $0x10] sm:$0xff] %vm250, %v1135
    %1141 = vst.msk [vmem:[#allocation2 + $0x18] sm:$0xff] %vm250, %v1138
    %1144 = vrot.lane.b32.xlu0 %v245, 96
    %v1145 = vpop.permute.xlu0 %1144
    %1146 = vrot.lane.b32.xlu0 %v248, 96
    %v1147 = vpop.permute.xlu0 %1146
    %v1151 = vsel %vm555, %v934, 0
    %v1154 = vsel %vm555, %v935, 0
    %1156 = vmatpush.msra.mxu0 0.0
    %1157 = vmatpush.msra.mxu0 0.0
    %1158 = vmatpush.msra.mxu0 0.0
    %1159 = vmatpush.msra.mxu0 0.0
    %1160 = vmatpush.msra.mxu0 0.0
    %1161 = vmatpush.msra.mxu0 0.0
    %1162 = vmatpush.msra.mxu0 0.0
    %1163 = vmatpush.msra.mxu0 0.0
    %1164 = vmatpush.msra.mxu0 0.0
    %1165 = vmatpush.msra.mxu0 0.0
    %1166 = vmatpush.msra.mxu0 0.0
    %1167 = vmatpush.msra.mxu0 0.0
    %1168 = vmatpush.msra.mxu0 0.0
    %1169 = vmatpush.msra.mxu0 0.0
    %1170 = vmatpush.msra.mxu0 %v1147
    %1171 = vmatpush.msra.mxu0 %v1145
    %1172 = vmatmul.f32.gmra.mxu0 %v1151
    %v1173 = vpop.f32.mrf.mxu0
    %v1174 = vadd.f32 0.0, %v1173
    %1175 = vmatmul.f32.gmra.mxu0 %v1154
    %v1176 = vpop.f32.mrf.mxu0
    %v1177 = vadd.f32 0.0, %v1176
    %1178 = vdwg.mxu0
    %1181 = vrot.lane.b32.xlu0 %v1174, 32
    %v1182 = vpop.permute.xlu0 %1181
    %1183 = vrot.lane.b32.xlu0 %v1177, 32
    %v1184 = vpop.permute.xlu0 %1183
    %1187 = vst.msk [vmem:[#allocation2 + $0x10] sm:$0xff] %vm1016, %v1182
    %1188 = vst.msk [vmem:[#allocation2 + $0x18] sm:$0xff] %vm1016, %v1184
    %1189 = vrot.lane.b32.xlu0 %v245, 64
    %v1190 = vpop.permute.xlu0 %1189
    %1191 = vrot.lane.b32.xlu0 %v248, 64
    %v1192 = vpop.permute.xlu0 %1191
    %v1196 = vsel %vm555, %v936, 0
    %v1199 = vsel %vm555, %v937, 0
    %1201 = vmatpush.msra.mxu0 0.0
    %1202 = vmatpush.msra.mxu0 0.0
    %1203 = vmatpush.msra.mxu0 0.0
    %1204 = vmatpush.msra.mxu0 0.0
    %1205 = vmatpush.msra.mxu0 0.0
    %1206 = vmatpush.msra.mxu0 0.0
    %1207 = vmatpush.msra.mxu0 0.0
    %1208 = vmatpush.msra.mxu0 0.0
    %1209 = vmatpush.msra.mxu0 0.0
    %1210 = vmatpush.msra.mxu0 0.0
    %1211 = vmatpush.msra.mxu0 0.0
    %1212 = vmatpush.msra.mxu0 0.0
    %1213 = vmatpush.msra.mxu0 0.0
    %1214 = vmatpush.msra.mxu0 0.0
    %1215 = vmatpush.msra.mxu0 %v1192
    %1216 = vmatpush.msra.mxu0 %v1190
    %1217 = vmatmul.f32.gmra.mxu0 %v1196
    %v1218 = vpop.f32.mrf.mxu0
    %v1219 = vadd.f32 0.0, %v1218
    %1220 = vmatmul.f32.gmra.mxu0 %v1199
    %v1221 = vpop.f32.mrf.mxu0
    %v1222 = vadd.f32 0.0, %v1221
    %1223 = vdwg.mxu0
    %1226 = vrot.lane.b32.xlu0 %v1219, 64
    %v1227 = vpop.permute.xlu0 %1226
    %1228 = vrot.lane.b32.xlu0 %v1222, 64
    %v1229 = vpop.permute.xlu0 %1228
    %1232 = vst.msk [vmem:[#allocation2 + $0x10] sm:$0xff] %vm1062, %v1227
    %1233 = vst.msk [vmem:[#allocation2 + $0x18] sm:$0xff] %vm1062, %v1229
    %1234 = vrot.lane.b32.xlu0 %v245, 32
    %v1235 = vpop.permute.xlu0 %1234
    %1236 = vrot.lane.b32.xlu0 %v248, 32
    %v1237 = vpop.permute.xlu0 %1236
    %v1241 = vsel %vm555, %v938, 0
    %v1244 = vsel %vm555, %v939, 0
    %1246 = vmatpush.msra.mxu0 0.0
    %1247 = vmatpush.msra.mxu0 0.0
    %1248 = vmatpush.msra.mxu0 0.0
    %1249 = vmatpush.msra.mxu0 0.0
    %1250 = vmatpush.msra.mxu0 0.0
    %1251 = vmatpush.msra.mxu0 0.0
    %1252 = vmatpush.msra.mxu0 0.0
    %1253 = vmatpush.msra.mxu0 0.0
    %1254 = vmatpush.msra.mxu0 0.0
    %1255 = vmatpush.msra.mxu0 0.0
    %1256 = vmatpush.msra.mxu0 0.0
    %1257 = vmatpush.msra.mxu0 0.0
    %1258 = vmatpush.msra.mxu0 0.0
    %1259 = vmatpush.msra.mxu0 0.0
    %1260 = vmatpush.msra.mxu0 %v1237
    %1261 = vmatpush.msra.mxu0 %v1235
    %1262 = vmatmul.f32.gmra.mxu0 %v1241
    %v1263 = vpop.f32.mrf.mxu0
    %v1264 = vadd.f32 0.0, %v1263
    %1265 = vmatmul.f32.gmra.mxu0 %v1244
    %v1266 = vpop.f32.mrf.mxu0
    %v1267 = vadd.f32 0.0, %v1266
    %1268 = vdwg.mxu0
    %1271 = vrot.lane.b32.xlu0 %v1264, 96
    %v1272 = vpop.permute.xlu0 %1271
    %1273 = vrot.lane.b32.xlu0 %v1267, 96
    %v1274 = vpop.permute.xlu0 %1273
    %1277 = vst.msk [vmem:[#allocation2 + $0x10] sm:$0xff] %vm1108, %v1272
    %1278 = vst.msk [vmem:[#allocation2 + $0x18] sm:$0xff] %vm1108, %v1274
    %v1279 = vld [vmem:[#allocation2] sm:$0xff]
    %v1280 = vld [vmem:[#allocation2 + $0x8] sm:$0xff]
    %v1281 = vld [vmem:[#allocation2 + $0x10] sm:$0xff]
    %v1282 = vld [vmem:[#allocation2 + $0x18] sm:$0xff]
    %v1283 = vld [vmem:[#allocation9] sm:$0xff]
    %v1284 = vld [vmem:[#allocation9 + $0x8] sm:$0xff]
    %v1285 = vld [vmem:[#allocation9 + $0x10] sm:$0xff]
    %v1286 = vld [vmem:[#allocation9 + $0x18] sm:$0xff]
    %v1287 = vld [vmem:[#allocation9 + $0x20] sm:$0xff]
    %v1288 = vld [vmem:[#allocation9 + $0x28] sm:$0xff]
    %v1289 = vld [vmem:[#allocation9 + $0x30] sm:$0xff]
    %v1290 = vld [vmem:[#allocation9 + $0x38] sm:$0xff]
    %v1291 = vld [vmem:[#allocation9 + $0x40] sm:$0xff]
    %v1292 = vld [vmem:[#allocation9 + $0x48] sm:$0xff]
    %v1293 = vld [vmem:[#allocation9 + $0x50] sm:$0xff]
    %v1294 = vld [vmem:[#allocation9 + $0x58] sm:$0xff]
    %v1295 = vld [vmem:[#allocation9 + $0x60] sm:$0xff]
    %v1296 = vld [vmem:[#allocation9 + $0x68] sm:$0xff]
    %v1297 = vld [vmem:[#allocation9 + $0x70] sm:$0xff]
    %v1298 = vld [vmem:[#allocation9 + $0x78] sm:$0xff]
    %v1299 = vld [vmem:[%s4] sm:$0x1]
    %v1301 = vperm.slane %v1299, 0
    %1303 = vmatpush.msra.mxu0 %v1298
    %1304 = vmatpush.msra.mxu0 %v1297
    %1305 = vmatpush.msra.mxu0 %v1296
    %1306 = vmatpush.msra.mxu0 %v1295
    %1307 = vmatpush.msra.mxu0 %v1294
    %1308 = vmatpush.msra.mxu0 %v1293
    %1309 = vmatpush.msra.mxu0 %v1292
    %1310 = vmatpush.msra.mxu0 %v1291
    %1311 = vmatpush.msra.mxu0 %v1290
    %1312 = vmatpush.msra.mxu0 %v1289
    %1313 = vmatpush.msra.mxu0 %v1288
    %1314 = vmatpush.msra.mxu0 %v1287
    %1315 = vmatpush.msra.mxu0 %v1286
    %1316 = vmatpush.msra.mxu0 %v1285
    %1317 = vmatpush.msra.mxu0 %v1284
    %1318 = vmatpush.msra.mxu0 %v1283
    %1319 = vmatmul.f32.gmra.mxu0 %v1279
    %v1320 = vpop.f32.mrf.mxu0
    %v1321 = vadd.f32 %v1301, %v1320
    %1322 = vmatmul.f32.gmra.mxu0 %v1280
    %v1323 = vpop.f32.mrf.mxu0
    %v1324 = vadd.f32 %v1301, %v1323
    %1325 = vmatmul.f32.gmra.mxu0 %v1281
    %v1326 = vpop.f32.mrf.mxu0
    %v1327 = vadd.f32 %v1301, %v1326
    %1328 = vmatmul.f32.gmra.mxu0 %v1282
    %v1329 = vpop.f32.mrf.mxu0
    %v1330 = vadd.f32 %v1301, %v1329
    %1331 = vdwg.mxu0
    %v1332 = vld [vmem:[#allocation11] sm:$0xff]
    %v1333 = vld [vmem:[#allocation11 + $0x8] sm:$0xff]
    %v1334 = vld [vmem:[#allocation11 + $0x10] sm:$0xff]
    %v1335 = vld [vmem:[#allocation11 + $0x18] sm:$0xff]
    %v1336 = vld [vmem:[#allocation11 + $0x20] sm:$0xff]
    %v1337 = vld [vmem:[#allocation11 + $0x28] sm:$0xff]
    %v1338 = vld [vmem:[#allocation11 + $0x30] sm:$0xff]
    %v1339 = vld [vmem:[#allocation11 + $0x38] sm:$0xff]
    %v1340 = vld [vmem:[#allocation11 + $0x40] sm:$0xff]
    %v1341 = vld [vmem:[#allocation11 + $0x48] sm:$0xff]
    %v1342 = vld [vmem:[#allocation11 + $0x50] sm:$0xff]
    %v1343 = vld [vmem:[#allocation11 + $0x58] sm:$0xff]
    %v1344 = vld [vmem:[#allocation11 + $0x60] sm:$0xff]
    %v1345 = vld [vmem:[#allocation11 + $0x68] sm:$0xff]
    %v1346 = vld [vmem:[#allocation11 + $0x70] sm:$0xff]
    %v1347 = vld [vmem:[#allocation11 + $0x78] sm:$0xff]
    %v1348 = vld [vmem:[%s6] sm:$0x1]
    %v1350 = vperm.slane %v1348, 0
    %1352 = vmatpush.msra.mxu0 %v1347
    %1353 = vmatpush.msra.mxu0 %v1346
    %1354 = vmatpush.msra.mxu0 %v1345
    %1355 = vmatpush.msra.mxu0 %v1344
    %1356 = vmatpush.msra.mxu0 %v1343
    %1357 = vmatpush.msra.mxu0 %v1342
    %1358 = vmatpush.msra.mxu0 %v1341
    %1359 = vmatpush.msra.mxu0 %v1340
    %1360 = vmatpush.msra.mxu0 %v1339
    %1361 = vmatpush.msra.mxu0 %v1338
    %1362 = vmatpush.msra.mxu0 %v1337
    %1363 = vmatpush.msra.mxu0 %v1336
    %1364 = vmatpush.msra.mxu0 %v1335
    %1365 = vmatpush.msra.mxu0 %v1334
    %1366 = vmatpush.msra.mxu0 %v1333
    %1367 = vmatpush.msra.mxu0 %v1332
    %1368 = vmatmul.f32.gmra.mxu0 %v1321
    %v1369 = vpop.f32.mrf.mxu0
    %v1370 = vadd.f32 %v1350, %v1369
    %1371 = vmatmul.f32.gmra.mxu0 %v1324
    %v1372 = vpop.f32.mrf.mxu0
    %v1373 = vadd.f32 %v1350, %v1372
    %1374 = vmatmul.f32.gmra.mxu0 %v1327
    %v1375 = vpop.f32.mrf.mxu0
    %v1376 = vadd.f32 %v1350, %v1375
    %1377 = vmatmul.f32.gmra.mxu0 %v1330
    %v1378 = vpop.f32.mrf.mxu0
    %v1379 = vadd.f32 %v1350, %v1378
    %1380 = vdwg.mxu0
    %1381 = vst [vmem:[#allocation12] sm:$0xff] %v1370
    %1382 = vst [vmem:[#allocation12 + $0x8] sm:$0xff] %v1373
    %1383 = vst [vmem:[#allocation12 + $0x10] sm:$0xff] %v1376
    %1384 = vst [vmem:[#allocation12 + $0x18] sm:$0xff] %v1379
    // Predicated region
    $region50: #{point_mae_attention.1} parent=1 // pred_check
      _
    $region51: #{point_mae_attention.1} parent=1 // pred_check_branch
      %1386 = sbr.rel (0) target = $region53
    $region52: #{point_mae_attention.1} parent=1 // pred_region
      %1388 = vsyncadd [#allocation5], 0
      %s1389 = sshll.u32 [#allocation12], 4
      %s1390 = int_to_ptr.vmem [resolvable:$true] %s1389
      %s1391 = sshll.u32 %s7, 4
      %s1392 = int_to_ptr.hbm [resolvable:$true] %s1391
      %1397 = dma.vmem_to_hbm [thread:$0]  %s1390, 512, %s1392, [#allocation5], 128, 128, 8
    $region53: #{point_mae_attention.1} parent=1 // pred_fallthru
      _
    // Predicated region
    $region54: #{point_mae_attention.1} parent=1 // pred_check
      _
    $region55: #{point_mae_attention.1} parent=1 // pred_check_branch
      %1399 = sbr.rel (0) target = $region57
    $region56: #{point_mae_attention.1} parent=1 // pred_region
      %1401 = dma.done [#allocation5], 512
    $region57: #{point_mae_attention.1} parent=1 // pred_fallthru
      _
    %1402 = vsyncpa [#allocation4], 1
    %1403 = vsyncpa [#allocation7], 1
    %1404 = vsyncpa [#allocation10], 1
    %1405 = vsyncpa [#allocation5], 1

</llo_original>
